<compile_context>
chip_gen: v7x
topology: tpu7x:2x2x1
jax: 0.10.0
libtpu: 0.0.40
codegen_flags: <defaults>
</compile_context>

<pallas_src>
import functools

import jax
import jax.numpy as jnp
from jax.experimental import pallas as pl
from jax.experimental.pallas import tpu as pltpu

EPS = 1e-5


def _meta_arch_kernel(x_ref, w_ref, gb_ref, m_ref, out_ref,
                      *, N, CIN, H, W, COUT):
    HW = H * W
    NHW = N * HW

    x = x_ref[...]       # [N*CIN, HW]  row (n, ci) = flattened image plane
    wmat = w_ref[...]    # [COUT, CIN*9], column index = ci*9 + ki*3 + kj
    gb = gb_ref[...]     # [COUT, 2]  -> (gamma, beta)
    masks = m_ref[...]   # [9, HW]    per-tap 'same'-padding validity masks

    # --- Build the 9 shifted+masked tap views of every input plane.  One XLU
    # lane-roll + one VPU mul per tap; lanes that wrap around the roll are
    # exactly the lanes the mask zeroes (|shift| <= W+1 < HW), reproducing the
    # conv's zero padding.
    taps = []
    for ki in range(3):
        for kj in range(3):
            t = ki * 3 + kj
            off = (ki - 1) * W + (kj - 1)
            if off == 0:
                taps.append(x)                                   # center tap
            else:
                xs = pltpu.roll(x, shift=(-off) % HW, axis=1)    # [N*CIN, HW]
                taps.append(xs * masks[t:t + 1, :])

    inv_nhw = 1.0 / NHW
    inv_hw = 1.0 / HW

    # --- Conv2d 3x3 as VPU broadcast-FMAs into lane-dense [COUT, HW]
    # accumulators, one per (image, ki) -> 3*N independent chains for ILP.
    accs = []
    for n in range(N):
        parts = []
        for ki in range(3):
            a = jnp.zeros((COUT, HW), jnp.float32)
            for kj in range(3):
                t = ki * 3 + kj
                for ci in range(CIN):
                    c = ci * 9 + t
                    wcol = wmat[:, c:c + 1]                      # [COUT, 1]
                    row = taps[t][n * CIN + ci:n * CIN + ci + 1, :]  # [1, HW]
                    a = a + wcol * row                           # [COUT, HW]
            parts.append(a)
        accs.append(parts[0] + parts[1] + parts[2])              # per-image conv

    # --- BatchNorm2d (training): two-pass batch stats over (N, H, W).
    # Conv bias intentionally omitted -- it cancels exactly in the mean
    # subtraction below (training-mode BN only).
    s1 = jnp.zeros((COUT, 1), jnp.float32)
    for n in range(N):
        s1 = s1 + jnp.sum(accs[n], axis=1, keepdims=True)
    mean = s1 * inv_nhw                                          # [COUT, 1]

    centered = [accs[n] - mean for n in range(N)]
    s2 = jnp.zeros((COUT, 1), jnp.float32)
    for n in range(N):
        s2 = s2 + jnp.sum(centered[n] * centered[n], axis=1, keepdims=True)
    var = s2 * inv_nhw                                           # biased var

    scale = gb[:, 0:1] * jax.lax.rsqrt(var + EPS)                # gamma folded
    beta = gb[:, 1:2]

    # --- ReLU -> per-image AdaptiveAvgPool2d((1,1)) -> Frobenius norm.
    ssq = jnp.zeros((1, 1), jnp.float32)
    for n in range(N):
        y = jnp.maximum(centered[n] * scale + beta, 0.0)         # BN + ReLU
        pooled = jnp.sum(y, axis=1, keepdims=True) * inv_hw      # [COUT, 1]
        ssq = ssq + jnp.sum(pooled * pooled, keepdims=True)      # (1, 1)
    out_ref[...] = jnp.sqrt(ssq)


def meta_arch_forward(x, conv_w, conv_b, gamma, beta):
    """x: [N, CIN, H, W] float32 (NCHW, as in PyTorch). Returns {'loss': scalar}."""
    del conv_b  # cancels exactly under training-mode BatchNorm (see kernel).
    N, CIN, H, W = x.shape
    COUT = conv_w.shape[0]
    HW = H * W

    # Wrapper-side layout is FREE contiguous reshapes only (no transpose, no
    # pad, no extra HBM pass over x).
    xplanes = x.astype(jnp.float32).reshape(N * CIN, HW)          # [N*CIN, HW]
    wmat = conv_w.astype(jnp.float32).reshape(COUT, CIN * 9)      # [COUT, 27]
    gb = jnp.stack([gamma, beta], axis=1).astype(jnp.float32)     # [COUT, 2]

    # Per-tap 'same'-padding validity masks (tiny constant input; keeps integer
    # div/mod off the kernel VPU for arbitrary H, W).
    pos = jnp.arange(HW, dtype=jnp.int32)
    row = pos // W
    col = pos % W
    mask_rows = []
    for ki in range(3):
        for kj in range(3):
            dh, dw = ki - 1, kj - 1
            valid = ((row + dh >= 0) & (row + dh < H) &
                     (col + dw >= 0) & (col + dw < W))
            mask_rows.append(valid.astype(jnp.float32))
    masks = jnp.stack(mask_rows, axis=0)                          # [9, HW]

    kern = functools.partial(_meta_arch_kernel,
                             N=N, CIN=CIN, H=H, W=W, COUT=COUT)
    vmem = pl.BlockSpec(memory_space=pltpu.MemorySpace.VMEM)
    flops = 2 * 9 * CIN * COUT * N * HW + 10 * COUT * N * HW
    bytes_accessed = 4 * (N * CIN * HW + COUT * CIN * 9 + COUT * 2 + 9 * HW + 1)
    loss = pl.pallas_call(
        kern,
        out_shape=jax.ShapeDtypeStruct((1, 1), jnp.float32),
        in_specs=[vmem, vmem, vmem, vmem],
        out_specs=vmem,
        cost_estimate=pl.CostEstimate(flops=flops,
                                      transcendentals=COUT + 1,
                                      bytes_accessed=bytes_accessed),
    )(xplanes, wmat, gb, masks)
    return {"loss": loss[0, 0]}


def _reference(x, conv_w, conv_b, gamma, beta):
    # Pure-JAX reference of the same forward (f32-exact conv), for sanity check.
    conv = jax.lax.conv_general_dilated(
        x, conv_w, window_strides=(1, 1), padding=((1, 1), (1, 1)),
        dimension_numbers=("NCHW", "OIHW", "NCHW"),
        precision=jax.lax.Precision.HIGHEST)
    conv = conv + conv_b[None, :, None, None]
    mean = jnp.mean(conv, axis=(0, 2, 3), keepdims=True)
    var = jnp.mean((conv - mean) ** 2, axis=(0, 2, 3), keepdims=True)
    xn = (conv - mean) / jnp.sqrt(var + EPS)
    xn = xn * gamma[None, :, None, None] + beta[None, :, None, None]
    xn = jnp.maximum(xn, 0.0)
    pooled = jnp.mean(xn, axis=(2, 3))
    return jnp.sqrt(jnp.sum(pooled * pooled))


if __name__ == "__main__":
    key = jax.random.PRNGKey(0)
    k_x, k_w, k_b = jax.random.split(key, 3)

    N, Cin, H, W = 2, 3, 16, 16
    Cout = 4

    x = jax.random.normal(k_x, (N, Cin, H, W), dtype=jnp.float32)
    # Deterministic synthetic parameters (not a checkpoint load).
    conv_w = jax.random.normal(k_w, (Cout, Cin, 3, 3), dtype=jnp.float32) * 0.1
    conv_b = jax.random.normal(k_b, (Cout,), dtype=jnp.float32) * 0.1
    gamma = jnp.ones((Cout,), dtype=jnp.float32)   # BatchNorm2d default weight
    beta = jnp.zeros((Cout,), dtype=jnp.float32)   # BatchNorm2d default bias

    out = meta_arch_forward(x, conv_w, conv_b, gamma, beta)
    loss = jax.block_until_ready(out["loss"])

    ref = jax.block_until_ready(_reference(x, conv_w, conv_b, gamma, beta))
    assert jnp.allclose(loss, ref, rtol=1e-4, atol=1e-5), (loss, ref)

    print("KERNEL_OK")
</pallas_src>

<mosaic_0001>
module attributes {stable_mosaic.version = 11 : i64} {
  func.func @_meta_arch_kernel(%arg0: memref<6x256xf32, #tpu.memory_space<vmem>>, %arg1: memref<4x27xf32, #tpu.memory_space<vmem>>, %arg2: memref<4x2xf32, #tpu.memory_space<vmem>>, %arg3: memref<9x256xf32, #tpu.memory_space<vmem>>, %arg4: memref<1x1xf32, #tpu.memory_space<vmem>>) attributes {dimension_semantics = [], scalar_prefetch = 0 : i64, scratch_operands = 0 : i64, tpu.core_type = #tpu.core_type<tc>} {
    %c0 = arith.constant 0 : index
    %c0_0 = arith.constant 0 : index
    %0 = vector.load %arg0[%c0, %c0_0] : memref<6x256xf32, #tpu.memory_space<vmem>>, vector<6x256xf32>
    %c0_1 = arith.constant 0 : index
    %c0_2 = arith.constant 0 : index
    %1 = vector.load %arg1[%c0_1, %c0_2] : memref<4x27xf32, #tpu.memory_space<vmem>>, vector<4x27xf32>
    %c0_3 = arith.constant 0 : index
    %c0_4 = arith.constant 0 : index
    %2 = vector.load %arg2[%c0_3, %c0_4] : memref<4x2xf32, #tpu.memory_space<vmem>>, vector<4x2xf32>
    %c0_5 = arith.constant 0 : index
    %c0_6 = arith.constant 0 : index
    %3 = vector.load %arg3[%c0_5, %c0_6] : memref<9x256xf32, #tpu.memory_space<vmem>>, vector<9x256xf32>
    %c17_i32 = arith.constant 17 : i32
    %4 = tpu.dynamic_rotate %0 by %c17_i32 dim 1 : vector<6x256xf32>, i32 -> vector<6x256xf32>
    %5 = vector.extract_strided_slice %3 {offsets = [0, 0], sizes = [1, 256], strides = [1, 1]} : vector<9x256xf32> to vector<1x256xf32>
    %6 = vector.broadcast %5 : vector<1x256xf32> to vector<6x256xf32>
    %7 = arith.mulf %4, %6 : vector<6x256xf32>
    %c16_i32 = arith.constant 16 : i32
    %8 = tpu.dynamic_rotate %0 by %c16_i32 dim 1 : vector<6x256xf32>, i32 -> vector<6x256xf32>
    %9 = vector.extract_strided_slice %3 {offsets = [1, 0], sizes = [1, 256], strides = [1, 1]} : vector<9x256xf32> to vector<1x256xf32>
    %10 = vector.broadcast %9 : vector<1x256xf32> to vector<6x256xf32>
    %11 = arith.mulf %8, %10 : vector<6x256xf32>
    %c15_i32 = arith.constant 15 : i32
    %12 = tpu.dynamic_rotate %0 by %c15_i32 dim 1 : vector<6x256xf32>, i32 -> vector<6x256xf32>
    %13 = vector.extract_strided_slice %3 {offsets = [2, 0], sizes = [1, 256], strides = [1, 1]} : vector<9x256xf32> to vector<1x256xf32>
    %14 = vector.broadcast %13 : vector<1x256xf32> to vector<6x256xf32>
    %15 = arith.mulf %12, %14 : vector<6x256xf32>
    %c1_i32 = arith.constant 1 : i32
    %16 = tpu.dynamic_rotate %0 by %c1_i32 dim 1 : vector<6x256xf32>, i32 -> vector<6x256xf32>
    %17 = vector.extract_strided_slice %3 {offsets = [3, 0], sizes = [1, 256], strides = [1, 1]} : vector<9x256xf32> to vector<1x256xf32>
    %18 = vector.broadcast %17 : vector<1x256xf32> to vector<6x256xf32>
    %19 = arith.mulf %16, %18 : vector<6x256xf32>
    %c255_i32 = arith.constant 255 : i32
    %20 = tpu.dynamic_rotate %0 by %c255_i32 dim 1 : vector<6x256xf32>, i32 -> vector<6x256xf32>
    %21 = vector.extract_strided_slice %3 {offsets = [5, 0], sizes = [1, 256], strides = [1, 1]} : vector<9x256xf32> to vector<1x256xf32>
    %22 = vector.broadcast %21 : vector<1x256xf32> to vector<6x256xf32>
    %23 = arith.mulf %20, %22 : vector<6x256xf32>
    %c241_i32 = arith.constant 241 : i32
    %24 = tpu.dynamic_rotate %0 by %c241_i32 dim 1 : vector<6x256xf32>, i32 -> vector<6x256xf32>
    %25 = vector.extract_strided_slice %3 {offsets = [6, 0], sizes = [1, 256], strides = [1, 1]} : vector<9x256xf32> to vector<1x256xf32>
    %26 = vector.broadcast %25 : vector<1x256xf32> to vector<6x256xf32>
    %27 = arith.mulf %24, %26 : vector<6x256xf32>
    %c240_i32 = arith.constant 240 : i32
    %28 = tpu.dynamic_rotate %0 by %c240_i32 dim 1 : vector<6x256xf32>, i32 -> vector<6x256xf32>
    %29 = vector.extract_strided_slice %3 {offsets = [7, 0], sizes = [1, 256], strides = [1, 1]} : vector<9x256xf32> to vector<1x256xf32>
    %30 = vector.broadcast %29 : vector<1x256xf32> to vector<6x256xf32>
    %31 = arith.mulf %28, %30 : vector<6x256xf32>
    %c239_i32 = arith.constant 239 : i32
    %32 = tpu.dynamic_rotate %0 by %c239_i32 dim 1 : vector<6x256xf32>, i32 -> vector<6x256xf32>
    %33 = vector.extract_strided_slice %3 {offsets = [8, 0], sizes = [1, 256], strides = [1, 1]} : vector<9x256xf32> to vector<1x256xf32>
    %34 = vector.broadcast %33 : vector<1x256xf32> to vector<6x256xf32>
    %35 = arith.mulf %32, %34 : vector<6x256xf32>
    %cst = arith.constant 0.000000e+00 : f32
    %36 = vector.broadcast %cst : f32 to vector<4x256xf32>
    %37 = vector.extract_strided_slice %1 {offsets = [0, 0], sizes = [4, 1], strides = [1, 1]} : vector<4x27xf32> to vector<4x1xf32>
    %38 = vector.extract_strided_slice %7 {offsets = [0, 0], sizes = [1, 256], strides = [1, 1]} : vector<6x256xf32> to vector<1x256xf32>
    %39 = vector.broadcast %37 : vector<4x1xf32> to vector<4x256xf32>
    %40 = vector.broadcast %38 : vector<1x256xf32> to vector<4x256xf32>
    %41 = arith.mulf %39, %40 : vector<4x256xf32>
    %42 = arith.addf %36, %41 : vector<4x256xf32>
    %43 = vector.extract_strided_slice %1 {offsets = [0, 9], sizes = [4, 1], strides = [1, 1]} : vector<4x27xf32> to vector<4x1xf32>
    %44 = vector.extract_strided_slice %7 {offsets = [1, 0], sizes = [1, 256], strides = [1, 1]} : vector<6x256xf32> to vector<1x256xf32>
    %45 = vector.broadcast %43 : vector<4x1xf32> to vector<4x256xf32>
    %46 = vector.broadcast %44 : vector<1x256xf32> to vector<4x256xf32>
    %47 = arith.mulf %45, %46 : vector<4x256xf32>
    %48 = arith.addf %42, %47 : vector<4x256xf32>
    %49 = vector.extract_strided_slice %1 {offsets = [0, 18], sizes = [4, 1], strides = [1, 1]} : vector<4x27xf32> to vector<4x1xf32>
    %50 = vector.extract_strided_slice %7 {offsets = [2, 0], sizes = [1, 256], strides = [1, 1]} : vector<6x256xf32> to vector<1x256xf32>
    %51 = vector.broadcast %49 : vector<4x1xf32> to vector<4x256xf32>
    %52 = vector.broadcast %50 : vector<1x256xf32> to vector<4x256xf32>
    %53 = arith.mulf %51, %52 : vector<4x256xf32>
    %54 = arith.addf %48, %53 : vector<4x256xf32>
    %55 = vector.extract_strided_slice %1 {offsets = [0, 1], sizes = [4, 1], strides = [1, 1]} : vector<4x27xf32> to vector<4x1xf32>
    %56 = vector.extract_strided_slice %11 {offsets = [0, 0], sizes = [1, 256], strides = [1, 1]} : vector<6x256xf32> to vector<1x256xf32>
    %57 = vector.broadcast %55 : vector<4x1xf32> to vector<4x256xf32>
    %58 = vector.broadcast %56 : vector<1x256xf32> to vector<4x256xf32>
    %59 = arith.mulf %57, %58 : vector<4x256xf32>
    %60 = arith.addf %54, %59 : vector<4x256xf32>
    %61 = vector.extract_strided_slice %1 {offsets = [0, 10], sizes = [4, 1], strides = [1, 1]} : vector<4x27xf32> to vector<4x1xf32>
    %62 = vector.extract_strided_slice %11 {offsets = [1, 0], sizes = [1, 256], strides = [1, 1]} : vector<6x256xf32> to vector<1x256xf32>
    %63 = vector.broadcast %61 : vector<4x1xf32> to vector<4x256xf32>
    %64 = vector.broadcast %62 : vector<1x256xf32> to vector<4x256xf32>
    %65 = arith.mulf %63, %64 : vector<4x256xf32>
    %66 = arith.addf %60, %65 : vector<4x256xf32>
    %67 = vector.extract_strided_slice %1 {offsets = [0, 19], sizes = [4, 1], strides = [1, 1]} : vector<4x27xf32> to vector<4x1xf32>
    %68 = vector.extract_strided_slice %11 {offsets = [2, 0], sizes = [1, 256], strides = [1, 1]} : vector<6x256xf32> to vector<1x256xf32>
    %69 = vector.broadcast %67 : vector<4x1xf32> to vector<4x256xf32>
    %70 = vector.broadcast %68 : vector<1x256xf32> to vector<4x256xf32>
    %71 = arith.mulf %69, %70 : vector<4x256xf32>
    %72 = arith.addf %66, %71 : vector<4x256xf32>
    %73 = vector.extract_strided_slice %1 {offsets = [0, 2], sizes = [4, 1], strides = [1, 1]} : vector<4x27xf32> to vector<4x1xf32>
    %74 = vector.extract_strided_slice %15 {offsets = [0, 0], sizes = [1, 256], strides = [1, 1]} : vector<6x256xf32> to vector<1x256xf32>
    %75 = vector.broadcast %73 : vector<4x1xf32> to vector<4x256xf32>
    %76 = vector.broadcast %74 : vector<1x256xf32> to vector<4x256xf32>
    %77 = arith.mulf %75, %76 : vector<4x256xf32>
    %78 = arith.addf %72, %77 : vector<4x256xf32>
    %79 = vector.extract_strided_slice %1 {offsets = [0, 11], sizes = [4, 1], strides = [1, 1]} : vector<4x27xf32> to vector<4x1xf32>
    %80 = vector.extract_strided_slice %15 {offsets = [1, 0], sizes = [1, 256], strides = [1, 1]} : vector<6x256xf32> to vector<1x256xf32>
    %81 = vector.broadcast %79 : vector<4x1xf32> to vector<4x256xf32>
    %82 = vector.broadcast %80 : vector<1x256xf32> to vector<4x256xf32>
    %83 = arith.mulf %81, %82 : vector<4x256xf32>
    %84 = arith.addf %78, %83 : vector<4x256xf32>
    %85 = vector.extract_strided_slice %1 {offsets = [0, 20], sizes = [4, 1], strides = [1, 1]} : vector<4x27xf32> to vector<4x1xf32>
    %86 = vector.extract_strided_slice %15 {offsets = [2, 0], sizes = [1, 256], strides = [1, 1]} : vector<6x256xf32> to vector<1x256xf32>
    %87 = vector.broadcast %85 : vector<4x1xf32> to vector<4x256xf32>
    %88 = vector.broadcast %86 : vector<1x256xf32> to vector<4x256xf32>
    %89 = arith.mulf %87, %88 : vector<4x256xf32>
    %90 = arith.addf %84, %89 : vector<4x256xf32>
    %cst_7 = arith.constant 0.000000e+00 : f32
    %91 = vector.broadcast %cst_7 : f32 to vector<4x256xf32>
    %92 = vector.extract_strided_slice %1 {offsets = [0, 3], sizes = [4, 1], strides = [1, 1]} : vector<4x27xf32> to vector<4x1xf32>
    %93 = vector.extract_strided_slice %19 {offsets = [0, 0], sizes = [1, 256], strides = [1, 1]} : vector<6x256xf32> to vector<1x256xf32>
    %94 = vector.broadcast %92 : vector<4x1xf32> to vector<4x256xf32>
    %95 = vector.broadcast %93 : vector<1x256xf32> to vector<4x256xf32>
    %96 = arith.mulf %94, %95 : vector<4x256xf32>
    %97 = arith.addf %91, %96 : vector<4x256xf32>
    %98 = vector.extract_strided_slice %1 {offsets = [0, 12], sizes = [4, 1], strides = [1, 1]} : vector<4x27xf32> to vector<4x1xf32>
    %99 = vector.extract_strided_slice %19 {offsets = [1, 0], sizes = [1, 256], strides = [1, 1]} : vector<6x256xf32> to vector<1x256xf32>
    %100 = vector.broadcast %98 : vector<4x1xf32> to vector<4x256xf32>
    %101 = vector.broadcast %99 : vector<1x256xf32> to vector<4x256xf32>
    %102 = arith.mulf %100, %101 : vector<4x256xf32>
    %103 = arith.addf %97, %102 : vector<4x256xf32>
    %104 = vector.extract_strided_slice %1 {offsets = [0, 21], sizes = [4, 1], strides = [1, 1]} : vector<4x27xf32> to vector<4x1xf32>
    %105 = vector.extract_strided_slice %19 {offsets = [2, 0], sizes = [1, 256], strides = [1, 1]} : vector<6x256xf32> to vector<1x256xf32>
    %106 = vector.broadcast %104 : vector<4x1xf32> to vector<4x256xf32>
    %107 = vector.broadcast %105 : vector<1x256xf32> to vector<4x256xf32>
    %108 = arith.mulf %106, %107 : vector<4x256xf32>
    %109 = arith.addf %103, %108 : vector<4x256xf32>
    %110 = vector.extract_strided_slice %1 {offsets = [0, 4], sizes = [4, 1], strides = [1, 1]} : vector<4x27xf32> to vector<4x1xf32>
    %111 = vector.extract_strided_slice %0 {offsets = [0, 0], sizes = [1, 256], strides = [1, 1]} : vector<6x256xf32> to vector<1x256xf32>
    %112 = vector.broadcast %110 : vector<4x1xf32> to vector<4x256xf32>
    %113 = vector.broadcast %111 : vector<1x256xf32> to vector<4x256xf32>
    %114 = arith.mulf %112, %113 : vector<4x256xf32>
    %115 = arith.addf %109, %114 : vector<4x256xf32>
    %116 = vector.extract_strided_slice %1 {offsets = [0, 13], sizes = [4, 1], strides = [1, 1]} : vector<4x27xf32> to vector<4x1xf32>
    %117 = vector.extract_strided_slice %0 {offsets = [1, 0], sizes = [1, 256], strides = [1, 1]} : vector<6x256xf32> to vector<1x256xf32>
    %118 = vector.broadcast %116 : vector<4x1xf32> to vector<4x256xf32>
    %119 = vector.broadcast %117 : vector<1x256xf32> to vector<4x256xf32>
    %120 = arith.mulf %118, %119 : vector<4x256xf32>
    %121 = arith.addf %115, %120 : vector<4x256xf32>
    %122 = vector.extract_strided_slice %1 {offsets = [0, 22], sizes = [4, 1], strides = [1, 1]} : vector<4x27xf32> to vector<4x1xf32>
    %123 = vector.extract_strided_slice %0 {offsets = [2, 0], sizes = [1, 256], strides = [1, 1]} : vector<6x256xf32> to vector<1x256xf32>
    %124 = vector.broadcast %122 : vector<4x1xf32> to vector<4x256xf32>
    %125 = vector.broadcast %123 : vector<1x256xf32> to vector<4x256xf32>
    %126 = arith.mulf %124, %125 : vector<4x256xf32>
    %127 = arith.addf %121, %126 : vector<4x256xf32>
    %128 = vector.extract_strided_slice %1 {offsets = [0, 5], sizes = [4, 1], strides = [1, 1]} : vector<4x27xf32> to vector<4x1xf32>
    %129 = vector.extract_strided_slice %23 {offsets = [0, 0], sizes = [1, 256], strides = [1, 1]} : vector<6x256xf32> to vector<1x256xf32>
    %130 = vector.broadcast %128 : vector<4x1xf32> to vector<4x256xf32>
    %131 = vector.broadcast %129 : vector<1x256xf32> to vector<4x256xf32>
    %132 = arith.mulf %130, %131 : vector<4x256xf32>
    %133 = arith.addf %127, %132 : vector<4x256xf32>
    %134 = vector.extract_strided_slice %1 {offsets = [0, 14], sizes = [4, 1], strides = [1, 1]} : vector<4x27xf32> to vector<4x1xf32>
    %135 = vector.extract_strided_slice %23 {offsets = [1, 0], sizes = [1, 256], strides = [1, 1]} : vector<6x256xf32> to vector<1x256xf32>
    %136 = vector.broadcast %134 : vector<4x1xf32> to vector<4x256xf32>
    %137 = vector.broadcast %135 : vector<1x256xf32> to vector<4x256xf32>
    %138 = arith.mulf %136, %137 : vector<4x256xf32>
    %139 = arith.addf %133, %138 : vector<4x256xf32>
    %140 = vector.extract_strided_slice %1 {offsets = [0, 23], sizes = [4, 1], strides = [1, 1]} : vector<4x27xf32> to vector<4x1xf32>
    %141 = vector.extract_strided_slice %23 {offsets = [2, 0], sizes = [1, 256], strides = [1, 1]} : vector<6x256xf32> to vector<1x256xf32>
    %142 = vector.broadcast %140 : vector<4x1xf32> to vector<4x256xf32>
    %143 = vector.broadcast %141 : vector<1x256xf32> to vector<4x256xf32>
    %144 = arith.mulf %142, %143 : vector<4x256xf32>
    %145 = arith.addf %139, %144 : vector<4x256xf32>
    %cst_8 = arith.constant 0.000000e+00 : f32
    %146 = vector.broadcast %cst_8 : f32 to vector<4x256xf32>
    %147 = vector.extract_strided_slice %1 {offsets = [0, 6], sizes = [4, 1], strides = [1, 1]} : vector<4x27xf32> to vector<4x1xf32>
    %148 = vector.extract_strided_slice %27 {offsets = [0, 0], sizes = [1, 256], strides = [1, 1]} : vector<6x256xf32> to vector<1x256xf32>
    %149 = vector.broadcast %147 : vector<4x1xf32> to vector<4x256xf32>
    %150 = vector.broadcast %148 : vector<1x256xf32> to vector<4x256xf32>
    %151 = arith.mulf %149, %150 : vector<4x256xf32>
    %152 = arith.addf %146, %151 : vector<4x256xf32>
    %153 = vector.extract_strided_slice %1 {offsets = [0, 15], sizes = [4, 1], strides = [1, 1]} : vector<4x27xf32> to vector<4x1xf32>
    %154 = vector.extract_strided_slice %27 {offsets = [1, 0], sizes = [1, 256], strides = [1, 1]} : vector<6x256xf32> to vector<1x256xf32>
    %155 = vector.broadcast %153 : vector<4x1xf32> to vector<4x256xf32>
    %156 = vector.broadcast %154 : vector<1x256xf32> to vector<4x256xf32>
    %157 = arith.mulf %155, %156 : vector<4x256xf32>
    %158 = arith.addf %152, %157 : vector<4x256xf32>
    %159 = vector.extract_strided_slice %1 {offsets = [0, 24], sizes = [4, 1], strides = [1, 1]} : vector<4x27xf32> to vector<4x1xf32>
    %160 = vector.extract_strided_slice %27 {offsets = [2, 0], sizes = [1, 256], strides = [1, 1]} : vector<6x256xf32> to vector<1x256xf32>
    %161 = vector.broadcast %159 : vector<4x1xf32> to vector<4x256xf32>
    %162 = vector.broadcast %160 : vector<1x256xf32> to vector<4x256xf32>
    %163 = arith.mulf %161, %162 : vector<4x256xf32>
    %164 = arith.addf %158, %163 : vector<4x256xf32>
    %165 = vector.extract_strided_slice %1 {offsets = [0, 7], sizes = [4, 1], strides = [1, 1]} : vector<4x27xf32> to vector<4x1xf32>
    %166 = vector.extract_strided_slice %31 {offsets = [0, 0], sizes = [1, 256], strides = [1, 1]} : vector<6x256xf32> to vector<1x256xf32>
    %167 = vector.broadcast %165 : vector<4x1xf32> to vector<4x256xf32>
    %168 = vector.broadcast %166 : vector<1x256xf32> to vector<4x256xf32>
    %169 = arith.mulf %167, %168 : vector<4x256xf32>
    %170 = arith.addf %164, %169 : vector<4x256xf32>
    %171 = vector.extract_strided_slice %1 {offsets = [0, 16], sizes = [4, 1], strides = [1, 1]} : vector<4x27xf32> to vector<4x1xf32>
    %172 = vector.extract_strided_slice %31 {offsets = [1, 0], sizes = [1, 256], strides = [1, 1]} : vector<6x256xf32> to vector<1x256xf32>
    %173 = vector.broadcast %171 : vector<4x1xf32> to vector<4x256xf32>
    %174 = vector.broadcast %172 : vector<1x256xf32> to vector<4x256xf32>
    %175 = arith.mulf %173, %174 : vector<4x256xf32>
    %176 = arith.addf %170, %175 : vector<4x256xf32>
    %177 = vector.extract_strided_slice %1 {offsets = [0, 25], sizes = [4, 1], strides = [1, 1]} : vector<4x27xf32> to vector<4x1xf32>
    %178 = vector.extract_strided_slice %31 {offsets = [2, 0], sizes = [1, 256], strides = [1, 1]} : vector<6x256xf32> to vector<1x256xf32>
    %179 = vector.broadcast %177 : vector<4x1xf32> to vector<4x256xf32>
    %180 = vector.broadcast %178 : vector<1x256xf32> to vector<4x256xf32>
    %181 = arith.mulf %179, %180 : vector<4x256xf32>
    %182 = arith.addf %176, %181 : vector<4x256xf32>
    %183 = vector.extract_strided_slice %1 {offsets = [0, 8], sizes = [4, 1], strides = [1, 1]} : vector<4x27xf32> to vector<4x1xf32>
    %184 = vector.extract_strided_slice %35 {offsets = [0, 0], sizes = [1, 256], strides = [1, 1]} : vector<6x256xf32> to vector<1x256xf32>
    %185 = vector.broadcast %183 : vector<4x1xf32> to vector<4x256xf32>
    %186 = vector.broadcast %184 : vector<1x256xf32> to vector<4x256xf32>
    %187 = arith.mulf %185, %186 : vector<4x256xf32>
    %188 = arith.addf %182, %187 : vector<4x256xf32>
    %189 = vector.extract_strided_slice %1 {offsets = [0, 17], sizes = [4, 1], strides = [1, 1]} : vector<4x27xf32> to vector<4x1xf32>
    %190 = vector.extract_strided_slice %35 {offsets = [1, 0], sizes = [1, 256], strides = [1, 1]} : vector<6x256xf32> to vector<1x256xf32>
    %191 = vector.broadcast %189 : vector<4x1xf32> to vector<4x256xf32>
    %192 = vector.broadcast %190 : vector<1x256xf32> to vector<4x256xf32>
    %193 = arith.mulf %191, %192 : vector<4x256xf32>
    %194 = arith.addf %188, %193 : vector<4x256xf32>
    %195 = vector.extract_strided_slice %1 {offsets = [0, 26], sizes = [4, 1], strides = [1, 1]} : vector<4x27xf32> to vector<4x1xf32>
    %196 = vector.extract_strided_slice %35 {offsets = [2, 0], sizes = [1, 256], strides = [1, 1]} : vector<6x256xf32> to vector<1x256xf32>
    %197 = vector.broadcast %195 : vector<4x1xf32> to vector<4x256xf32>
    %198 = vector.broadcast %196 : vector<1x256xf32> to vector<4x256xf32>
    %199 = arith.mulf %197, %198 : vector<4x256xf32>
    %200 = arith.addf %194, %199 : vector<4x256xf32>
    %201 = arith.addf %90, %145 : vector<4x256xf32>
    %202 = arith.addf %201, %200 : vector<4x256xf32>
    %cst_9 = arith.constant 0.000000e+00 : f32
    %203 = vector.broadcast %cst_9 : f32 to vector<4x256xf32>
    %204 = vector.extract_strided_slice %1 {offsets = [0, 0], sizes = [4, 1], strides = [1, 1]} : vector<4x27xf32> to vector<4x1xf32>
    %205 = vector.extract_strided_slice %7 {offsets = [3, 0], sizes = [1, 256], strides = [1, 1]} : vector<6x256xf32> to vector<1x256xf32>
    %206 = vector.broadcast %204 : vector<4x1xf32> to vector<4x256xf32>
    %207 = vector.broadcast %205 : vector<1x256xf32> to vector<4x256xf32>
    %208 = arith.mulf %206, %207 : vector<4x256xf32>
    %209 = arith.addf %203, %208 : vector<4x256xf32>
    %210 = vector.extract_strided_slice %1 {offsets = [0, 9], sizes = [4, 1], strides = [1, 1]} : vector<4x27xf32> to vector<4x1xf32>
    %211 = vector.extract_strided_slice %7 {offsets = [4, 0], sizes = [1, 256], strides = [1, 1]} : vector<6x256xf32> to vector<1x256xf32>
    %212 = vector.broadcast %210 : vector<4x1xf32> to vector<4x256xf32>
    %213 = vector.broadcast %211 : vector<1x256xf32> to vector<4x256xf32>
    %214 = arith.mulf %212, %213 : vector<4x256xf32>
    %215 = arith.addf %209, %214 : vector<4x256xf32>
    %216 = vector.extract_strided_slice %1 {offsets = [0, 18], sizes = [4, 1], strides = [1, 1]} : vector<4x27xf32> to vector<4x1xf32>
    %217 = vector.extract_strided_slice %7 {offsets = [5, 0], sizes = [1, 256], strides = [1, 1]} : vector<6x256xf32> to vector<1x256xf32>
    %218 = vector.broadcast %216 : vector<4x1xf32> to vector<4x256xf32>
    %219 = vector.broadcast %217 : vector<1x256xf32> to vector<4x256xf32>
    %220 = arith.mulf %218, %219 : vector<4x256xf32>
    %221 = arith.addf %215, %220 : vector<4x256xf32>
    %222 = vector.extract_strided_slice %1 {offsets = [0, 1], sizes = [4, 1], strides = [1, 1]} : vector<4x27xf32> to vector<4x1xf32>
    %223 = vector.extract_strided_slice %11 {offsets = [3, 0], sizes = [1, 256], strides = [1, 1]} : vector<6x256xf32> to vector<1x256xf32>
    %224 = vector.broadcast %222 : vector<4x1xf32> to vector<4x256xf32>
    %225 = vector.broadcast %223 : vector<1x256xf32> to vector<4x256xf32>
    %226 = arith.mulf %224, %225 : vector<4x256xf32>
    %227 = arith.addf %221, %226 : vector<4x256xf32>
    %228 = vector.extract_strided_slice %1 {offsets = [0, 10], sizes = [4, 1], strides = [1, 1]} : vector<4x27xf32> to vector<4x1xf32>
    %229 = vector.extract_strided_slice %11 {offsets = [4, 0], sizes = [1, 256], strides = [1, 1]} : vector<6x256xf32> to vector<1x256xf32>
    %230 = vector.broadcast %228 : vector<4x1xf32> to vector<4x256xf32>
    %231 = vector.broadcast %229 : vector<1x256xf32> to vector<4x256xf32>
    %232 = arith.mulf %230, %231 : vector<4x256xf32>
    %233 = arith.addf %227, %232 : vector<4x256xf32>
    %234 = vector.extract_strided_slice %1 {offsets = [0, 19], sizes = [4, 1], strides = [1, 1]} : vector<4x27xf32> to vector<4x1xf32>
    %235 = vector.extract_strided_slice %11 {offsets = [5, 0], sizes = [1, 256], strides = [1, 1]} : vector<6x256xf32> to vector<1x256xf32>
    %236 = vector.broadcast %234 : vector<4x1xf32> to vector<4x256xf32>
    %237 = vector.broadcast %235 : vector<1x256xf32> to vector<4x256xf32>
    %238 = arith.mulf %236, %237 : vector<4x256xf32>
    %239 = arith.addf %233, %238 : vector<4x256xf32>
    %240 = vector.extract_strided_slice %1 {offsets = [0, 2], sizes = [4, 1], strides = [1, 1]} : vector<4x27xf32> to vector<4x1xf32>
    %241 = vector.extract_strided_slice %15 {offsets = [3, 0], sizes = [1, 256], strides = [1, 1]} : vector<6x256xf32> to vector<1x256xf32>
    %242 = vector.broadcast %240 : vector<4x1xf32> to vector<4x256xf32>
    %243 = vector.broadcast %241 : vector<1x256xf32> to vector<4x256xf32>
    %244 = arith.mulf %242, %243 : vector<4x256xf32>
    %245 = arith.addf %239, %244 : vector<4x256xf32>
    %246 = vector.extract_strided_slice %1 {offsets = [0, 11], sizes = [4, 1], strides = [1, 1]} : vector<4x27xf32> to vector<4x1xf32>
    %247 = vector.extract_strided_slice %15 {offsets = [4, 0], sizes = [1, 256], strides = [1, 1]} : vector<6x256xf32> to vector<1x256xf32>
    %248 = vector.broadcast %246 : vector<4x1xf32> to vector<4x256xf32>
    %249 = vector.broadcast %247 : vector<1x256xf32> to vector<4x256xf32>
    %250 = arith.mulf %248, %249 : vector<4x256xf32>
    %251 = arith.addf %245, %250 : vector<4x256xf32>
    %252 = vector.extract_strided_slice %1 {offsets = [0, 20], sizes = [4, 1], strides = [1, 1]} : vector<4x27xf32> to vector<4x1xf32>
    %253 = vector.extract_strided_slice %15 {offsets = [5, 0], sizes = [1, 256], strides = [1, 1]} : vector<6x256xf32> to vector<1x256xf32>
    %254 = vector.broadcast %252 : vector<4x1xf32> to vector<4x256xf32>
    %255 = vector.broadcast %253 : vector<1x256xf32> to vector<4x256xf32>
    %256 = arith.mulf %254, %255 : vector<4x256xf32>
    %257 = arith.addf %251, %256 : vector<4x256xf32>
    %cst_10 = arith.constant 0.000000e+00 : f32
    %258 = vector.broadcast %cst_10 : f32 to vector<4x256xf32>
    %259 = vector.extract_strided_slice %1 {offsets = [0, 3], sizes = [4, 1], strides = [1, 1]} : vector<4x27xf32> to vector<4x1xf32>
    %260 = vector.extract_strided_slice %19 {offsets = [3, 0], sizes = [1, 256], strides = [1, 1]} : vector<6x256xf32> to vector<1x256xf32>
    %261 = vector.broadcast %259 : vector<4x1xf32> to vector<4x256xf32>
    %262 = vector.broadcast %260 : vector<1x256xf32> to vector<4x256xf32>
    %263 = arith.mulf %261, %262 : vector<4x256xf32>
    %264 = arith.addf %258, %263 : vector<4x256xf32>
    %265 = vector.extract_strided_slice %1 {offsets = [0, 12], sizes = [4, 1], strides = [1, 1]} : vector<4x27xf32> to vector<4x1xf32>
    %266 = vector.extract_strided_slice %19 {offsets = [4, 0], sizes = [1, 256], strides = [1, 1]} : vector<6x256xf32> to vector<1x256xf32>
    %267 = vector.broadcast %265 : vector<4x1xf32> to vector<4x256xf32>
    %268 = vector.broadcast %266 : vector<1x256xf32> to vector<4x256xf32>
    %269 = arith.mulf %267, %268 : vector<4x256xf32>
    %270 = arith.addf %264, %269 : vector<4x256xf32>
    %271 = vector.extract_strided_slice %1 {offsets = [0, 21], sizes = [4, 1], strides = [1, 1]} : vector<4x27xf32> to vector<4x1xf32>
    %272 = vector.extract_strided_slice %19 {offsets = [5, 0], sizes = [1, 256], strides = [1, 1]} : vector<6x256xf32> to vector<1x256xf32>
    %273 = vector.broadcast %271 : vector<4x1xf32> to vector<4x256xf32>
    %274 = vector.broadcast %272 : vector<1x256xf32> to vector<4x256xf32>
    %275 = arith.mulf %273, %274 : vector<4x256xf32>
    %276 = arith.addf %270, %275 : vector<4x256xf32>
    %277 = vector.extract_strided_slice %1 {offsets = [0, 4], sizes = [4, 1], strides = [1, 1]} : vector<4x27xf32> to vector<4x1xf32>
    %278 = vector.extract_strided_slice %0 {offsets = [3, 0], sizes = [1, 256], strides = [1, 1]} : vector<6x256xf32> to vector<1x256xf32>
    %279 = vector.broadcast %277 : vector<4x1xf32> to vector<4x256xf32>
    %280 = vector.broadcast %278 : vector<1x256xf32> to vector<4x256xf32>
    %281 = arith.mulf %279, %280 : vector<4x256xf32>
    %282 = arith.addf %276, %281 : vector<4x256xf32>
    %283 = vector.extract_strided_slice %1 {offsets = [0, 13], sizes = [4, 1], strides = [1, 1]} : vector<4x27xf32> to vector<4x1xf32>
    %284 = vector.extract_strided_slice %0 {offsets = [4, 0], sizes = [1, 256], strides = [1, 1]} : vector<6x256xf32> to vector<1x256xf32>
    %285 = vector.broadcast %283 : vector<4x1xf32> to vector<4x256xf32>
    %286 = vector.broadcast %284 : vector<1x256xf32> to vector<4x256xf32>
    %287 = arith.mulf %285, %286 : vector<4x256xf32>
    %288 = arith.addf %282, %287 : vector<4x256xf32>
    %289 = vector.extract_strided_slice %1 {offsets = [0, 22], sizes = [4, 1], strides = [1, 1]} : vector<4x27xf32> to vector<4x1xf32>
    %290 = vector.extract_strided_slice %0 {offsets = [5, 0], sizes = [1, 256], strides = [1, 1]} : vector<6x256xf32> to vector<1x256xf32>
    %291 = vector.broadcast %289 : vector<4x1xf32> to vector<4x256xf32>
    %292 = vector.broadcast %290 : vector<1x256xf32> to vector<4x256xf32>
    %293 = arith.mulf %291, %292 : vector<4x256xf32>
    %294 = arith.addf %288, %293 : vector<4x256xf32>
    %295 = vector.extract_strided_slice %1 {offsets = [0, 5], sizes = [4, 1], strides = [1, 1]} : vector<4x27xf32> to vector<4x1xf32>
    %296 = vector.extract_strided_slice %23 {offsets = [3, 0], sizes = [1, 256], strides = [1, 1]} : vector<6x256xf32> to vector<1x256xf32>
    %297 = vector.broadcast %295 : vector<4x1xf32> to vector<4x256xf32>
    %298 = vector.broadcast %296 : vector<1x256xf32> to vector<4x256xf32>
    %299 = arith.mulf %297, %298 : vector<4x256xf32>
    %300 = arith.addf %294, %299 : vector<4x256xf32>
    %301 = vector.extract_strided_slice %1 {offsets = [0, 14], sizes = [4, 1], strides = [1, 1]} : vector<4x27xf32> to vector<4x1xf32>
    %302 = vector.extract_strided_slice %23 {offsets = [4, 0], sizes = [1, 256], strides = [1, 1]} : vector<6x256xf32> to vector<1x256xf32>
    %303 = vector.broadcast %301 : vector<4x1xf32> to vector<4x256xf32>
    %304 = vector.broadcast %302 : vector<1x256xf32> to vector<4x256xf32>
    %305 = arith.mulf %303, %304 : vector<4x256xf32>
    %306 = arith.addf %300, %305 : vector<4x256xf32>
    %307 = vector.extract_strided_slice %1 {offsets = [0, 23], sizes = [4, 1], strides = [1, 1]} : vector<4x27xf32> to vector<4x1xf32>
    %308 = vector.extract_strided_slice %23 {offsets = [5, 0], sizes = [1, 256], strides = [1, 1]} : vector<6x256xf32> to vector<1x256xf32>
    %309 = vector.broadcast %307 : vector<4x1xf32> to vector<4x256xf32>
    %310 = vector.broadcast %308 : vector<1x256xf32> to vector<4x256xf32>
    %311 = arith.mulf %309, %310 : vector<4x256xf32>
    %312 = arith.addf %306, %311 : vector<4x256xf32>
    %cst_11 = arith.constant 0.000000e+00 : f32
    %313 = vector.broadcast %cst_11 : f32 to vector<4x256xf32>
    %314 = vector.extract_strided_slice %1 {offsets = [0, 6], sizes = [4, 1], strides = [1, 1]} : vector<4x27xf32> to vector<4x1xf32>
    %315 = vector.extract_strided_slice %27 {offsets = [3, 0], sizes = [1, 256], strides = [1, 1]} : vector<6x256xf32> to vector<1x256xf32>
    %316 = vector.broadcast %314 : vector<4x1xf32> to vector<4x256xf32>
    %317 = vector.broadcast %315 : vector<1x256xf32> to vector<4x256xf32>
    %318 = arith.mulf %316, %317 : vector<4x256xf32>
    %319 = arith.addf %313, %318 : vector<4x256xf32>
    %320 = vector.extract_strided_slice %1 {offsets = [0, 15], sizes = [4, 1], strides = [1, 1]} : vector<4x27xf32> to vector<4x1xf32>
    %321 = vector.extract_strided_slice %27 {offsets = [4, 0], sizes = [1, 256], strides = [1, 1]} : vector<6x256xf32> to vector<1x256xf32>
    %322 = vector.broadcast %320 : vector<4x1xf32> to vector<4x256xf32>
    %323 = vector.broadcast %321 : vector<1x256xf32> to vector<4x256xf32>
    %324 = arith.mulf %322, %323 : vector<4x256xf32>
    %325 = arith.addf %319, %324 : vector<4x256xf32>
    %326 = vector.extract_strided_slice %1 {offsets = [0, 24], sizes = [4, 1], strides = [1, 1]} : vector<4x27xf32> to vector<4x1xf32>
    %327 = vector.extract_strided_slice %27 {offsets = [5, 0], sizes = [1, 256], strides = [1, 1]} : vector<6x256xf32> to vector<1x256xf32>
    %328 = vector.broadcast %326 : vector<4x1xf32> to vector<4x256xf32>
    %329 = vector.broadcast %327 : vector<1x256xf32> to vector<4x256xf32>
    %330 = arith.mulf %328, %329 : vector<4x256xf32>
    %331 = arith.addf %325, %330 : vector<4x256xf32>
    %332 = vector.extract_strided_slice %1 {offsets = [0, 7], sizes = [4, 1], strides = [1, 1]} : vector<4x27xf32> to vector<4x1xf32>
    %333 = vector.extract_strided_slice %31 {offsets = [3, 0], sizes = [1, 256], strides = [1, 1]} : vector<6x256xf32> to vector<1x256xf32>
    %334 = vector.broadcast %332 : vector<4x1xf32> to vector<4x256xf32>
    %335 = vector.broadcast %333 : vector<1x256xf32> to vector<4x256xf32>
    %336 = arith.mulf %334, %335 : vector<4x256xf32>
    %337 = arith.addf %331, %336 : vector<4x256xf32>
    %338 = vector.extract_strided_slice %1 {offsets = [0, 16], sizes = [4, 1], strides = [1, 1]} : vector<4x27xf32> to vector<4x1xf32>
    %339 = vector.extract_strided_slice %31 {offsets = [4, 0], sizes = [1, 256], strides = [1, 1]} : vector<6x256xf32> to vector<1x256xf32>
    %340 = vector.broadcast %338 : vector<4x1xf32> to vector<4x256xf32>
    %341 = vector.broadcast %339 : vector<1x256xf32> to vector<4x256xf32>
    %342 = arith.mulf %340, %341 : vector<4x256xf32>
    %343 = arith.addf %337, %342 : vector<4x256xf32>
    %344 = vector.extract_strided_slice %1 {offsets = [0, 25], sizes = [4, 1], strides = [1, 1]} : vector<4x27xf32> to vector<4x1xf32>
    %345 = vector.extract_strided_slice %31 {offsets = [5, 0], sizes = [1, 256], strides = [1, 1]} : vector<6x256xf32> to vector<1x256xf32>
    %346 = vector.broadcast %344 : vector<4x1xf32> to vector<4x256xf32>
    %347 = vector.broadcast %345 : vector<1x256xf32> to vector<4x256xf32>
    %348 = arith.mulf %346, %347 : vector<4x256xf32>
    %349 = arith.addf %343, %348 : vector<4x256xf32>
    %350 = vector.extract_strided_slice %1 {offsets = [0, 8], sizes = [4, 1], strides = [1, 1]} : vector<4x27xf32> to vector<4x1xf32>
    %351 = vector.extract_strided_slice %35 {offsets = [3, 0], sizes = [1, 256], strides = [1, 1]} : vector<6x256xf32> to vector<1x256xf32>
    %352 = vector.broadcast %350 : vector<4x1xf32> to vector<4x256xf32>
    %353 = vector.broadcast %351 : vector<1x256xf32> to vector<4x256xf32>
    %354 = arith.mulf %352, %353 : vector<4x256xf32>
    %355 = arith.addf %349, %354 : vector<4x256xf32>
    %356 = vector.extract_strided_slice %1 {offsets = [0, 17], sizes = [4, 1], strides = [1, 1]} : vector<4x27xf32> to vector<4x1xf32>
    %357 = vector.extract_strided_slice %35 {offsets = [4, 0], sizes = [1, 256], strides = [1, 1]} : vector<6x256xf32> to vector<1x256xf32>
    %358 = vector.broadcast %356 : vector<4x1xf32> to vector<4x256xf32>
    %359 = vector.broadcast %357 : vector<1x256xf32> to vector<4x256xf32>
    %360 = arith.mulf %358, %359 : vector<4x256xf32>
    %361 = arith.addf %355, %360 : vector<4x256xf32>
    %362 = vector.extract_strided_slice %1 {offsets = [0, 26], sizes = [4, 1], strides = [1, 1]} : vector<4x27xf32> to vector<4x1xf32>
    %363 = vector.extract_strided_slice %35 {offsets = [5, 0], sizes = [1, 256], strides = [1, 1]} : vector<6x256xf32> to vector<1x256xf32>
    %364 = vector.broadcast %362 : vector<4x1xf32> to vector<4x256xf32>
    %365 = vector.broadcast %363 : vector<1x256xf32> to vector<4x256xf32>
    %366 = arith.mulf %364, %365 : vector<4x256xf32>
    %367 = arith.addf %361, %366 : vector<4x256xf32>
    %368 = arith.addf %257, %312 : vector<4x256xf32>
    %369 = arith.addf %368, %367 : vector<4x256xf32>
    %cst_12 = arith.constant 0.000000e+00 : f32
    %370 = vector.broadcast %cst_12 : f32 to vector<4x1xf32>
    %cst_13 = arith.constant dense<0.000000e+00> : vector<4xf32>
    %371 = vector.multi_reduction <add>, %202, %cst_13 [1] : vector<4x256xf32> to vector<4xf32>
    %372 = vector.shape_cast %371 : vector<4xf32> to vector<4x1xf32>
    %373 = arith.addf %370, %372 : vector<4x1xf32>
    %cst_14 = arith.constant dense<0.000000e+00> : vector<4xf32>
    %374 = vector.multi_reduction <add>, %369, %cst_14 [1] : vector<4x256xf32> to vector<4xf32>
    %375 = vector.shape_cast %374 : vector<4xf32> to vector<4x1xf32>
    %376 = arith.addf %373, %375 : vector<4x1xf32>
    %cst_15 = arith.constant 0.001953125 : f32
    %377 = vector.broadcast %cst_15 : f32 to vector<4x1xf32>
    %378 = arith.mulf %376, %377 : vector<4x1xf32>
    %379 = vector.broadcast %378 : vector<4x1xf32> to vector<4x256xf32>
    %380 = arith.subf %202, %379 : vector<4x256xf32>
    %381 = vector.broadcast %378 : vector<4x1xf32> to vector<4x256xf32>
    %382 = arith.subf %369, %381 : vector<4x256xf32>
    %cst_16 = arith.constant 0.000000e+00 : f32
    %383 = vector.broadcast %cst_16 : f32 to vector<4x1xf32>
    %384 = arith.mulf %380, %380 : vector<4x256xf32>
    %cst_17 = arith.constant dense<0.000000e+00> : vector<4xf32>
    %385 = vector.multi_reduction <add>, %384, %cst_17 [1] : vector<4x256xf32> to vector<4xf32>
    %386 = vector.shape_cast %385 : vector<4xf32> to vector<4x1xf32>
    %387 = arith.addf %383, %386 : vector<4x1xf32>
    %388 = arith.mulf %382, %382 : vector<4x256xf32>
    %cst_18 = arith.constant dense<0.000000e+00> : vector<4xf32>
    %389 = vector.multi_reduction <add>, %388, %cst_18 [1] : vector<4x256xf32> to vector<4xf32>
    %390 = vector.shape_cast %389 : vector<4xf32> to vector<4x1xf32>
    %391 = arith.addf %387, %390 : vector<4x1xf32>
    %cst_19 = arith.constant 0.001953125 : f32
    %392 = vector.broadcast %cst_19 : f32 to vector<4x1xf32>
    %393 = arith.mulf %391, %392 : vector<4x1xf32>
    %394 = vector.extract_strided_slice %2 {offsets = [0, 0], sizes = [4, 1], strides = [1, 1]} : vector<4x2xf32> to vector<4x1xf32>
    %cst_20 = arith.constant 9.99999974E-6 : f32
    %395 = vector.broadcast %cst_20 : f32 to vector<4x1xf32>
    %396 = arith.addf %393, %395 : vector<4x1xf32>
    %397 = math.rsqrt %396 : vector<4x1xf32>
    %398 = arith.mulf %394, %397 : vector<4x1xf32>
    %399 = vector.extract_strided_slice %2 {offsets = [0, 1], sizes = [4, 1], strides = [1, 1]} : vector<4x2xf32> to vector<4x1xf32>
    %cst_21 = arith.constant 0.000000e+00 : f32
    %400 = vector.broadcast %cst_21 : f32 to vector<1x1xf32>
    %401 = vector.broadcast %398 : vector<4x1xf32> to vector<4x256xf32>
    %402 = arith.mulf %380, %401 : vector<4x256xf32>
    %403 = vector.broadcast %399 : vector<4x1xf32> to vector<4x256xf32>
    %404 = arith.addf %402, %403 : vector<4x256xf32>
    %cst_22 = arith.constant 0.000000e+00 : f32
    %405 = vector.broadcast %cst_22 : f32 to vector<4x256xf32>
    %406 = arith.maximumf %404, %405 : vector<4x256xf32>
    %cst_23 = arith.constant dense<0.000000e+00> : vector<4xf32>
    %407 = vector.multi_reduction <add>, %406, %cst_23 [1] : vector<4x256xf32> to vector<4xf32>
    %408 = vector.shape_cast %407 : vector<4xf32> to vector<4x1xf32>
    %cst_24 = arith.constant 3.906250e-03 : f32
    %409 = vector.broadcast %cst_24 : f32 to vector<4x1xf32>
    %410 = arith.mulf %408, %409 : vector<4x1xf32>
    %411 = arith.mulf %410, %410 : vector<4x1xf32>
    %412 = vector.shape_cast %411 : vector<4x1xf32> to vector<1x4x1xf32>
    %cst_25 = arith.constant dense<0.000000e+00> : vector<1xf32>
    %413 = vector.multi_reduction <add>, %412, %cst_25 [1, 2] : vector<1x4x1xf32> to vector<1xf32>
    %414 = vector.shape_cast %413 : vector<1xf32> to vector<1x1x1xf32>
    %415 = vector.extract %414[0, 0, 0] : f32 from vector<1x1x1xf32>
    %416 = vector.broadcast %415 : f32 to vector<1x1xf32>
    %417 = arith.addf %400, %416 : vector<1x1xf32>
    %418 = vector.broadcast %398 : vector<4x1xf32> to vector<4x256xf32>
    %419 = arith.mulf %382, %418 : vector<4x256xf32>
    %420 = vector.broadcast %399 : vector<4x1xf32> to vector<4x256xf32>
    %421 = arith.addf %419, %420 : vector<4x256xf32>
    %cst_26 = arith.constant 0.000000e+00 : f32
    %422 = vector.broadcast %cst_26 : f32 to vector<4x256xf32>
    %423 = arith.maximumf %421, %422 : vector<4x256xf32>
    %cst_27 = arith.constant dense<0.000000e+00> : vector<4xf32>
    %424 = vector.multi_reduction <add>, %423, %cst_27 [1] : vector<4x256xf32> to vector<4xf32>
    %425 = vector.shape_cast %424 : vector<4xf32> to vector<4x1xf32>
    %cst_28 = arith.constant 3.906250e-03 : f32
    %426 = vector.broadcast %cst_28 : f32 to vector<4x1xf32>
    %427 = arith.mulf %425, %426 : vector<4x1xf32>
    %428 = arith.mulf %427, %427 : vector<4x1xf32>
    %429 = vector.shape_cast %428 : vector<4x1xf32> to vector<1x4x1xf32>
    %cst_29 = arith.constant dense<0.000000e+00> : vector<1xf32>
    %430 = vector.multi_reduction <add>, %429, %cst_29 [1, 2] : vector<1x4x1xf32> to vector<1xf32>
    %431 = vector.shape_cast %430 : vector<1xf32> to vector<1x1x1xf32>
    %432 = vector.extract %431[0, 0, 0] : f32 from vector<1x1x1xf32>
    %433 = vector.broadcast %432 : f32 to vector<1x1xf32>
    %434 = arith.addf %417, %433 : vector<1x1xf32>
    %435 = math.sqrt %434 : vector<1x1xf32>
    %c0_30 = arith.constant 0 : index
    %c0_31 = arith.constant 0 : index
    %436 = vector.load %arg4[%c0_30, %c0_31] : memref<1x1xf32, #tpu.memory_space<vmem>>, vector<1x1xf32>
    tpu.vector_store %arg4[%c0_30, %c0_31], %435 {strides = array<i32>} : memref<1x1xf32, #tpu.memory_space<vmem>>, vector<1x1xf32>,
    return
  }
}

</mosaic_0001>

<llo_original>
// kernel: tpu_custom_call.1
$region0: #{tpu_custom_call.1}
  #allocation0 [shape = 'u32[]', space=smem, size = 0x4, offset = 0x4, fixed_abs, tag = 'smem constant byte address 0x4 - core index']
  #allocation1 [shape = 'u32[144,128]{1,0:T(1,128)}', space=vmem, size = 0x12000, scoped, tag = 'internal scratch']
  %s0 = inlined_call_operand.hbm [shape: f32[6,256], index: 0, kind: input, shape index: {}]
  %s1 = inlined_call_operand.vmem [shape: f32[4,27], index: 1, kind: input, shape index: {}]
  %s2 = inlined_call_operand.vmem [shape: f32[4,2], index: 2, kind: input, shape index: {}]
  %s3 = inlined_call_operand.hbm [shape: f32[9,256], index: 3, kind: input, shape index: {}]
  %s4 = inlined_call_operand.hbm [shape: f32[1,1], index: 4, kind: output, shape index: {}]
  %s5 = sld [smem:[#allocation0]]
  $region34: #{tpu_custom_call.1} parent=0
    _
  %s7 = ssub.s32 1, %s5
  %s8 = scalar_select 0, %s7, %s5
  $region1: #{tpu_custom_call.1} parent=0
    #allocation2 [shape = 'u8[8192]{0}', space=vmem, size = 0x2000, scoped, tag = 'input window, operand 0, single buffered']
    #allocation3 [shape = 's32[1]{0}', space=sflag, size = 0x4, scoped, tag = 'scoped memory for tpu_custom_call.1']
    #allocation4 [shape = 's32[1]{0}', space=sflag, size = 0x4, scoped, tag = 'scoped memory for tpu_custom_call.1']
    #allocation5 [shape = 'u8[16384]{0}', space=vmem, size = 0x4000, scoped, tag = 'input window, operand 3, single buffered']
    #allocation6 [shape = 's32[1]{0}', space=sflag, size = 0x4, scoped, tag = 'scoped memory for tpu_custom_call.1']
    #allocation7 [shape = 'u8[512]{0}', space=vmem, size = 0x400, scoped, tag = 'output window, operand 0, single buffered']
    %9 = vsyncpa [#allocation3], 0
    %10 = vsyncpa [#allocation6], 0
    %11 = vsyncpa [#allocation4], 0
    // Predicated region
    $region2: #{tpu_custom_call.1} parent=1 // pred_check
      _
    $region3: #{tpu_custom_call.1} parent=1 // pred_check_branch
      %13 = sbr.rel (0) target = $region5
    $region4: #{tpu_custom_call.1} parent=1 // pred_region
      %s15 = ssub.s32 256, 256
      %16 = vsyncadd [#allocation3], %s15
      %s18 = sshll.u32 [#allocation2], 4
      %s19 = int_to_ptr.vmem [resolvable:$true] %s18
      %21 = dma.hbm_to_vmem [thread:$0]  %s0, 256, %s19, [#allocation3]
    $region5: #{tpu_custom_call.1} parent=1 // pred_fallthru
      _
    // Predicated region
    $region6: #{tpu_custom_call.1} parent=1 // pred_check
      _
    $region7: #{tpu_custom_call.1} parent=1 // pred_check_branch
      %23 = sbr.rel (0) target = $region9
    $region8: #{tpu_custom_call.1} parent=1 // pred_region
      _
    $region9: #{tpu_custom_call.1} parent=1 // pred_fallthru
      _
    // Predicated region
    $region10: #{tpu_custom_call.1} parent=1 // pred_check
      _
    $region11: #{tpu_custom_call.1} parent=1 // pred_check_branch
      %25 = sbr.rel (0) target = $region13
    $region12: #{tpu_custom_call.1} parent=1 // pred_region
      _
    $region13: #{tpu_custom_call.1} parent=1 // pred_fallthru
      _
    // Predicated region
    $region14: #{tpu_custom_call.1} parent=1 // pred_check
      _
    $region15: #{tpu_custom_call.1} parent=1 // pred_check_branch
      %27 = sbr.rel (0) target = $region17
    $region16: #{tpu_custom_call.1} parent=1 // pred_region
      %s29 = ssub.s32 512, 512
      %30 = vsyncadd [#allocation6], %s29
      %s31 = sshll.u32 [#allocation5], 4
      %s32 = int_to_ptr.vmem [resolvable:$true] %s31
      %37 = dma.hbm_to_vmem [thread:$0]  %s3, 512, %s32, [#allocation6], 256, 256, 16
    $region17: #{tpu_custom_call.1} parent=1 // pred_fallthru
      _
    // Predicated region
    $region18: #{tpu_custom_call.1} parent=1 // pred_check
      _
    $region19: #{tpu_custom_call.1} parent=1 // pred_check_branch
      %39 = sbr.rel (0) target = $region21
    $region20: #{tpu_custom_call.1} parent=1 // pred_region
      %40 = dma.done [#allocation3], 256
    $region21: #{tpu_custom_call.1} parent=1 // pred_fallthru
      _
    // Predicated region
    $region22: #{tpu_custom_call.1} parent=1 // pred_check
      _
    $region23: #{tpu_custom_call.1} parent=1 // pred_check_branch
      %42 = sbr.rel (0) target = $region25
    $region24: #{tpu_custom_call.1} parent=1 // pred_region
      %43 = dma.done [#allocation6], 512
    $region25: #{tpu_custom_call.1} parent=1 // pred_fallthru
      _
    %v44 = vld [vmem:[#allocation2] sm:$0x3f]
    %v45 = vld [vmem:[#allocation2 + $0x8] sm:$0x3f]
    %v46 = vld [vmem:[%s1] sm:$0xf]
    %v47 = vld [vmem:[%s2] sm:$0xf]
    %v48 = vld [vmem:[#allocation5] sm:$0xff]
    %v49 = vld [vmem:[#allocation5 + $0x8] sm:$0xff]
    %v50 = vld [vmem:[#allocation5 + $0x10] sm:$0x1]
    %v51 = vld [vmem:[#allocation5 + $0x18] sm:$0x1]
    %52 = vrot.lane.b32.xlu0 %v44, 17
    %v53 = vpop.permute.xlu0 %52
    %54 = vrot.lane.b32.xlu0 %v45, 17
    %v55 = vpop.permute.xlu0 %54
    %v56 = vlaneseq
    %v57 = vand.u32 %v56, 127
    %vm58 = vcmp.lt.s32.totalorder %v57, 17
    %v59 = vsel %vm58, %v53, %v55
    %v60 = vsel %vm58, %v55, %v53
    %v61 = vlaneseq
    %v62 = vshrl.u32 %v61, 7
    %v63 = vsub.s32 0, %v62
    %v64 = vrot.slane %v48, %v63
    %v65 = vlaneseq
    %v66 = vshrl.u32 %v65, 7
    %v67 = vsub.s32 0, %v66
    %v68 = vrot.slane %v49, %v67
    %v69 = vmul.f32 %v60, %v64
    %v70 = vmul.f32 %v59, %v68
    %71 = vrot.lane.b32.xlu0 %v44, 16
    %v72 = vpop.permute.xlu0 %71
    %73 = vrot.lane.b32.xlu0 %v45, 16
    %v74 = vpop.permute.xlu0 %73
    %vm75 = vcmp.lt.s32.totalorder %v57, 16
    %v76 = vsel %vm75, %v72, %v74
    %v77 = vsel %vm75, %v74, %v72
    %v78 = vlaneseq
    %v79 = vshrl.u32 %v78, 7
    %v80 = vsub.s32 1, %v79
    %v81 = vrot.slane %v48, %v80
    %v82 = vlaneseq
    %v83 = vshrl.u32 %v82, 7
    %v84 = vsub.s32 1, %v83
    %v85 = vrot.slane %v49, %v84
    %v86 = vmul.f32 %v77, %v81
    %v87 = vmul.f32 %v76, %v85
    %88 = vrot.lane.b32.xlu0 %v44, 15
    %v89 = vpop.permute.xlu0 %88
    %90 = vrot.lane.b32.xlu0 %v45, 15
    %v91 = vpop.permute.xlu0 %90
    %vm92 = vcmp.lt.s32.totalorder %v57, 15
    %v93 = vsel %vm92, %v89, %v91
    %v94 = vsel %vm92, %v91, %v89
    %v95 = vlaneseq
    %v96 = vshrl.u32 %v95, 7
    %v97 = vsub.s32 2, %v96
    %v98 = vrot.slane %v48, %v97
    %v99 = vlaneseq
    %v100 = vshrl.u32 %v99, 7
    %v101 = vsub.s32 2, %v100
    %v102 = vrot.slane %v49, %v101
    %v103 = vmul.f32 %v94, %v98
    %v104 = vmul.f32 %v93, %v102
    %105 = vrot.lane.b32.xlu0 %v44, 1
    %v106 = vpop.permute.xlu0 %105
    %107 = vrot.lane.b32.xlu0 %v45, 1
    %v108 = vpop.permute.xlu0 %107
    %vm109 = vcmp.lt.s32.totalorder %v57, 1
    %v110 = vsel %vm109, %v106, %v108
    %v111 = vsel %vm109, %v108, %v106
    %v112 = vlaneseq
    %v113 = vshrl.u32 %v112, 7
    %v114 = vsub.s32 3, %v113
    %v115 = vrot.slane %v48, %v114
    %v116 = vlaneseq
    %v117 = vshrl.u32 %v116, 7
    %v118 = vsub.s32 3, %v117
    %v119 = vrot.slane %v49, %v118
    %v120 = vmul.f32 %v111, %v115
    %v121 = vmul.f32 %v110, %v119
    %122 = vrot.lane.b32.xlu0 %v44, 127
    %v123 = vpop.permute.xlu0 %122
    %124 = vrot.lane.b32.xlu0 %v45, 127
    %v125 = vpop.permute.xlu0 %124
    %vm126 = vcmp.lt.s32.totalorder %v57, 127
    %v127 = vsel %vm126, %v123, %v125
    %v128 = vsel %vm126, %v125, %v123
    %v129 = vlaneseq
    %v130 = vshrl.u32 %v129, 7
    %v131 = vsub.s32 5, %v130
    %v132 = vrot.slane %v48, %v131
    %v133 = vlaneseq
    %v134 = vshrl.u32 %v133, 7
    %v135 = vsub.s32 5, %v134
    %v136 = vrot.slane %v49, %v135
    %v137 = vmul.f32 %v127, %v132
    %v138 = vmul.f32 %v128, %v136
    %139 = vrot.lane.b32.xlu0 %v44, 113
    %v140 = vpop.permute.xlu0 %139
    %141 = vrot.lane.b32.xlu0 %v45, 113
    %v142 = vpop.permute.xlu0 %141
    %vm143 = vcmp.lt.s32.totalorder %v57, 113
    %v144 = vsel %vm143, %v140, %v142
    %v145 = vsel %vm143, %v142, %v140
    %v146 = vlaneseq
    %v147 = vshrl.u32 %v146, 7
    %v148 = vsub.s32 6, %v147
    %v149 = vrot.slane %v48, %v148
    %v150 = vlaneseq
    %v151 = vshrl.u32 %v150, 7
    %v152 = vsub.s32 6, %v151
    %v153 = vrot.slane %v49, %v152
    %v154 = vmul.f32 %v144, %v149
    %v155 = vmul.f32 %v145, %v153
    %156 = vrot.lane.b32.xlu0 %v44, 112
    %v157 = vpop.permute.xlu0 %156
    %158 = vrot.lane.b32.xlu0 %v45, 112
    %v159 = vpop.permute.xlu0 %158
    %vm160 = vcmp.lt.s32.totalorder %v57, 112
    %v161 = vsel %vm160, %v157, %v159
    %v162 = vsel %vm160, %v159, %v157
    %v163 = vlaneseq
    %v164 = vshrl.u32 %v163, 7
    %v165 = vsub.s32 7, %v164
    %v166 = vrot.slane %v48, %v165
    %v167 = vlaneseq
    %v168 = vshrl.u32 %v167, 7
    %v169 = vsub.s32 7, %v168
    %v170 = vrot.slane %v49, %v169
    %v171 = vmul.f32 %v161, %v166
    %v172 = vmul.f32 %v162, %v170
    %173 = vrot.lane.b32.xlu0 %v44, 111
    %v174 = vpop.permute.xlu0 %173
    %175 = vrot.lane.b32.xlu0 %v45, 111
    %v176 = vpop.permute.xlu0 %175
    %vm177 = vcmp.lt.s32.totalorder %v57, 111
    %v178 = vsel %vm177, %v174, %v176
    %v179 = vsel %vm177, %v176, %v174
    %v180 = vlaneseq
    %v181 = vshrl.u32 %v180, 7
    %v182 = vsub.s32 0, %v181
    %v183 = vrot.slane %v50, %v182
    %v184 = vlaneseq
    %v185 = vshrl.u32 %v184, 7
    %v186 = vsub.s32 0, %v185
    %v187 = vrot.slane %v51, %v186
    %v188 = vmul.f32 %v178, %v183
    %v189 = vmul.f32 %v179, %v187
    %191 = vset.pattern.permute.xlu0 0
    %192 = vperm.xlu0 %191, %v46
    %v193 = vpop.permute.xlu0 %192
    %v195 = vlaneseq
    %v196 = vshrl.u32 %v195, 7
    %v197 = vsub.s32 0, %v196
    %v198 = vrot.slane %v69, %v197
    %v199 = vlaneseq
    %v200 = vshrl.u32 %v199, 7
    %v201 = vsub.s32 0, %v200
    %v202 = vrot.slane %v70, %v201
    %v203 = vmul.f32 %v193, %v198
    %v204 = vmul.f32 %v193, %v202
    %v205 = vadd.f32 %v203, 0.0
    %v206 = vadd.f32 %v204, 0.0
    %207 = vset.pattern.permute.xlu0 9
    %208 = vperm.xlu0 %207, %v46
    %v209 = vpop.permute.xlu0 %208
    %v211 = vlaneseq
    %v212 = vshrl.u32 %v211, 7
    %v213 = vsub.s32 1, %v212
    %v214 = vrot.slane %v69, %v213
    %v215 = vlaneseq
    %v216 = vshrl.u32 %v215, 7
    %v217 = vsub.s32 1, %v216
    %v218 = vrot.slane %v70, %v217
    %v219 = vmul.f32 %v209, %v214
    %v220 = vmul.f32 %v209, %v218
    %v221 = vadd.f32 %v205, %v219
    %v222 = vadd.f32 %v206, %v220
    %223 = vset.pattern.permute.xlu0 18
    %224 = vperm.xlu0 %223, %v46
    %v225 = vpop.permute.xlu0 %224
    %v227 = vlaneseq
    %v228 = vshrl.u32 %v227, 7
    %v229 = vsub.s32 2, %v228
    %v230 = vrot.slane %v69, %v229
    %v231 = vlaneseq
    %v232 = vshrl.u32 %v231, 7
    %v233 = vsub.s32 2, %v232
    %v234 = vrot.slane %v70, %v233
    %v235 = vmul.f32 %v225, %v230
    %v236 = vmul.f32 %v225, %v234
    %v237 = vadd.f32 %v221, %v235
    %v238 = vadd.f32 %v222, %v236
    %239 = vset.pattern.permute.xlu0 1
    %240 = vperm.xlu0 %239, %v46
    %v241 = vpop.permute.xlu0 %240
    %v243 = vlaneseq
    %v244 = vshrl.u32 %v243, 7
    %v245 = vsub.s32 0, %v244
    %v246 = vrot.slane %v86, %v245
    %v247 = vlaneseq
    %v248 = vshrl.u32 %v247, 7
    %v249 = vsub.s32 0, %v248
    %v250 = vrot.slane %v87, %v249
    %v251 = vmul.f32 %v241, %v246
    %v252 = vmul.f32 %v241, %v250
    %v253 = vadd.f32 %v237, %v251
    %v254 = vadd.f32 %v238, %v252
    %255 = vset.pattern.permute.xlu0 10
    %256 = vperm.xlu0 %255, %v46
    %v257 = vpop.permute.xlu0 %256
    %v259 = vlaneseq
    %v260 = vshrl.u32 %v259, 7
    %v261 = vsub.s32 1, %v260
    %v262 = vrot.slane %v86, %v261
    %v263 = vlaneseq
    %v264 = vshrl.u32 %v263, 7
    %v265 = vsub.s32 1, %v264
    %v266 = vrot.slane %v87, %v265
    %v267 = vmul.f32 %v257, %v262
    %v268 = vmul.f32 %v257, %v266
    %v269 = vadd.f32 %v253, %v267
    %v270 = vadd.f32 %v254, %v268
    %271 = vset.pattern.permute.xlu0 19
    %272 = vperm.xlu0 %271, %v46
    %v273 = vpop.permute.xlu0 %272
    %v275 = vlaneseq
    %v276 = vshrl.u32 %v275, 7
    %v277 = vsub.s32 2, %v276
    %v278 = vrot.slane %v86, %v277
    %v279 = vlaneseq
    %v280 = vshrl.u32 %v279, 7
    %v281 = vsub.s32 2, %v280
    %v282 = vrot.slane %v87, %v281
    %v283 = vmul.f32 %v273, %v278
    %v284 = vmul.f32 %v273, %v282
    %v285 = vadd.f32 %v269, %v283
    %v286 = vadd.f32 %v270, %v284
    %287 = vset.pattern.permute.xlu0 2
    %288 = vperm.xlu0 %287, %v46
    %v289 = vpop.permute.xlu0 %288
    %v291 = vlaneseq
    %v292 = vshrl.u32 %v291, 7
    %v293 = vsub.s32 0, %v292
    %v294 = vrot.slane %v103, %v293
    %v295 = vlaneseq
    %v296 = vshrl.u32 %v295, 7
    %v297 = vsub.s32 0, %v296
    %v298 = vrot.slane %v104, %v297
    %v299 = vmul.f32 %v289, %v294
    %v300 = vmul.f32 %v289, %v298
    %v301 = vadd.f32 %v285, %v299
    %v302 = vadd.f32 %v286, %v300
    %303 = vset.pattern.permute.xlu0 11
    %304 = vperm.xlu0 %303, %v46
    %v305 = vpop.permute.xlu0 %304
    %v307 = vlaneseq
    %v308 = vshrl.u32 %v307, 7
    %v309 = vsub.s32 1, %v308
    %v310 = vrot.slane %v103, %v309
    %v311 = vlaneseq
    %v312 = vshrl.u32 %v311, 7
    %v313 = vsub.s32 1, %v312
    %v314 = vrot.slane %v104, %v313
    %v315 = vmul.f32 %v305, %v310
    %v316 = vmul.f32 %v305, %v314
    %v317 = vadd.f32 %v301, %v315
    %v318 = vadd.f32 %v302, %v316
    %319 = vset.pattern.permute.xlu0 20
    %320 = vperm.xlu0 %319, %v46
    %v321 = vpop.permute.xlu0 %320
    %v323 = vlaneseq
    %v324 = vshrl.u32 %v323, 7
    %v325 = vsub.s32 2, %v324
    %v326 = vrot.slane %v103, %v325
    %v327 = vlaneseq
    %v328 = vshrl.u32 %v327, 7
    %v329 = vsub.s32 2, %v328
    %v330 = vrot.slane %v104, %v329
    %v331 = vmul.f32 %v321, %v326
    %v332 = vmul.f32 %v321, %v330
    %v333 = vadd.f32 %v317, %v331
    %v334 = vadd.f32 %v318, %v332
    %335 = vset.pattern.permute.xlu0 3
    %336 = vperm.xlu0 %335, %v46
    %v337 = vpop.permute.xlu0 %336
    %v339 = vlaneseq
    %v340 = vshrl.u32 %v339, 7
    %v341 = vsub.s32 0, %v340
    %v342 = vrot.slane %v120, %v341
    %v343 = vlaneseq
    %v344 = vshrl.u32 %v343, 7
    %v345 = vsub.s32 0, %v344
    %v346 = vrot.slane %v121, %v345
    %v347 = vmul.f32 %v337, %v342
    %v348 = vmul.f32 %v337, %v346
    %v349 = vadd.f32 %v347, 0.0
    %v350 = vadd.f32 %v348, 0.0
    %351 = vset.pattern.permute.xlu0 12
    %352 = vperm.xlu0 %351, %v46
    %v353 = vpop.permute.xlu0 %352
    %v355 = vlaneseq
    %v356 = vshrl.u32 %v355, 7
    %v357 = vsub.s32 1, %v356
    %v358 = vrot.slane %v120, %v357
    %v359 = vlaneseq
    %v360 = vshrl.u32 %v359, 7
    %v361 = vsub.s32 1, %v360
    %v362 = vrot.slane %v121, %v361
    %v363 = vmul.f32 %v353, %v358
    %v364 = vmul.f32 %v353, %v362
    %v365 = vadd.f32 %v349, %v363
    %v366 = vadd.f32 %v350, %v364
    %367 = vset.pattern.permute.xlu0 21
    %368 = vperm.xlu0 %367, %v46
    %v369 = vpop.permute.xlu0 %368
    %v371 = vlaneseq
    %v372 = vshrl.u32 %v371, 7
    %v373 = vsub.s32 2, %v372
    %v374 = vrot.slane %v120, %v373
    %v375 = vlaneseq
    %v376 = vshrl.u32 %v375, 7
    %v377 = vsub.s32 2, %v376
    %v378 = vrot.slane %v121, %v377
    %v379 = vmul.f32 %v369, %v374
    %v380 = vmul.f32 %v369, %v378
    %v381 = vadd.f32 %v365, %v379
    %v382 = vadd.f32 %v366, %v380
    %383 = vset.pattern.permute.xlu0 4
    %384 = vperm.xlu0 %383, %v46
    %v385 = vpop.permute.xlu0 %384
    %v387 = vlaneseq
    %v388 = vshrl.u32 %v387, 7
    %v389 = vsub.s32 0, %v388
    %v390 = vrot.slane %v44, %v389
    %v391 = vlaneseq
    %v392 = vshrl.u32 %v391, 7
    %v393 = vsub.s32 0, %v392
    %v394 = vrot.slane %v45, %v393
    %v395 = vmul.f32 %v385, %v390
    %v396 = vmul.f32 %v385, %v394
    %v397 = vadd.f32 %v381, %v395
    %v398 = vadd.f32 %v382, %v396
    %399 = vset.pattern.permute.xlu0 13
    %400 = vperm.xlu0 %399, %v46
    %v401 = vpop.permute.xlu0 %400
    %v403 = vlaneseq
    %v404 = vshrl.u32 %v403, 7
    %v405 = vsub.s32 1, %v404
    %v406 = vrot.slane %v44, %v405
    %v407 = vlaneseq
    %v408 = vshrl.u32 %v407, 7
    %v409 = vsub.s32 1, %v408
    %v410 = vrot.slane %v45, %v409
    %v411 = vmul.f32 %v401, %v406
    %v412 = vmul.f32 %v401, %v410
    %v413 = vadd.f32 %v397, %v411
    %v414 = vadd.f32 %v398, %v412
    %415 = vset.pattern.permute.xlu0 22
    %416 = vperm.xlu0 %415, %v46
    %v417 = vpop.permute.xlu0 %416
    %v419 = vlaneseq
    %v420 = vshrl.u32 %v419, 7
    %v421 = vsub.s32 2, %v420
    %v422 = vrot.slane %v44, %v421
    %v423 = vlaneseq
    %v424 = vshrl.u32 %v423, 7
    %v425 = vsub.s32 2, %v424
    %v426 = vrot.slane %v45, %v425
    %v427 = vmul.f32 %v417, %v422
    %v428 = vmul.f32 %v417, %v426
    %v429 = vadd.f32 %v413, %v427
    %v430 = vadd.f32 %v414, %v428
    %431 = vset.pattern.permute.xlu0 5
    %432 = vperm.xlu0 %431, %v46
    %v433 = vpop.permute.xlu0 %432
    %v435 = vlaneseq
    %v436 = vshrl.u32 %v435, 7
    %v437 = vsub.s32 0, %v436
    %v438 = vrot.slane %v137, %v437
    %v439 = vlaneseq
    %v440 = vshrl.u32 %v439, 7
    %v441 = vsub.s32 0, %v440
    %v442 = vrot.slane %v138, %v441
    %v443 = vmul.f32 %v433, %v438
    %v444 = vmul.f32 %v433, %v442
    %v445 = vadd.f32 %v429, %v443
    %v446 = vadd.f32 %v430, %v444
    %447 = vset.pattern.permute.xlu0 14
    %448 = vperm.xlu0 %447, %v46
    %v449 = vpop.permute.xlu0 %448
    %v451 = vlaneseq
    %v452 = vshrl.u32 %v451, 7
    %v453 = vsub.s32 1, %v452
    %v454 = vrot.slane %v137, %v453
    %v455 = vlaneseq
    %v456 = vshrl.u32 %v455, 7
    %v457 = vsub.s32 1, %v456
    %v458 = vrot.slane %v138, %v457
    %v459 = vmul.f32 %v449, %v454
    %v460 = vmul.f32 %v449, %v458
    %v461 = vadd.f32 %v445, %v459
    %v462 = vadd.f32 %v446, %v460
    %463 = vset.pattern.permute.xlu0 23
    %464 = vperm.xlu0 %463, %v46
    %v465 = vpop.permute.xlu0 %464
    %v467 = vlaneseq
    %v468 = vshrl.u32 %v467, 7
    %v469 = vsub.s32 2, %v468
    %v470 = vrot.slane %v137, %v469
    %v471 = vlaneseq
    %v472 = vshrl.u32 %v471, 7
    %v473 = vsub.s32 2, %v472
    %v474 = vrot.slane %v138, %v473
    %v475 = vmul.f32 %v465, %v470
    %v476 = vmul.f32 %v465, %v474
    %v477 = vadd.f32 %v461, %v475
    %v478 = vadd.f32 %v462, %v476
    %479 = vset.pattern.permute.xlu0 6
    %480 = vperm.xlu0 %479, %v46
    %v481 = vpop.permute.xlu0 %480
    %v483 = vlaneseq
    %v484 = vshrl.u32 %v483, 7
    %v485 = vsub.s32 0, %v484
    %v486 = vrot.slane %v154, %v485
    %v487 = vlaneseq
    %v488 = vshrl.u32 %v487, 7
    %v489 = vsub.s32 0, %v488
    %v490 = vrot.slane %v155, %v489
    %v491 = vmul.f32 %v481, %v486
    %v492 = vmul.f32 %v481, %v490
    %v493 = vadd.f32 %v491, 0.0
    %v494 = vadd.f32 %v492, 0.0
    %495 = vset.pattern.permute.xlu0 15
    %496 = vperm.xlu0 %495, %v46
    %v497 = vpop.permute.xlu0 %496
    %v499 = vlaneseq
    %v500 = vshrl.u32 %v499, 7
    %v501 = vsub.s32 1, %v500
    %v502 = vrot.slane %v154, %v501
    %v503 = vlaneseq
    %v504 = vshrl.u32 %v503, 7
    %v505 = vsub.s32 1, %v504
    %v506 = vrot.slane %v155, %v505
    %v507 = vmul.f32 %v497, %v502
    %v508 = vmul.f32 %v497, %v506
    %v509 = vadd.f32 %v493, %v507
    %v510 = vadd.f32 %v494, %v508
    %511 = vset.pattern.permute.xlu0 24
    %512 = vperm.xlu0 %511, %v46
    %v513 = vpop.permute.xlu0 %512
    %v515 = vlaneseq
    %v516 = vshrl.u32 %v515, 7
    %v517 = vsub.s32 2, %v516
    %v518 = vrot.slane %v154, %v517
    %v519 = vlaneseq
    %v520 = vshrl.u32 %v519, 7
    %v521 = vsub.s32 2, %v520
    %v522 = vrot.slane %v155, %v521
    %v523 = vmul.f32 %v513, %v518
    %v524 = vmul.f32 %v513, %v522
    %v525 = vadd.f32 %v509, %v523
    %v526 = vadd.f32 %v510, %v524
    %527 = vset.pattern.permute.xlu0 7
    %528 = vperm.xlu0 %527, %v46
    %v529 = vpop.permute.xlu0 %528
    %v531 = vlaneseq
    %v532 = vshrl.u32 %v531, 7
    %v533 = vsub.s32 0, %v532
    %v534 = vrot.slane %v171, %v533
    %v535 = vlaneseq
    %v536 = vshrl.u32 %v535, 7
    %v537 = vsub.s32 0, %v536
    %v538 = vrot.slane %v172, %v537
    %v539 = vmul.f32 %v529, %v534
    %v540 = vmul.f32 %v529, %v538
    %v541 = vadd.f32 %v525, %v539
    %v542 = vadd.f32 %v526, %v540
    %543 = vset.pattern.permute.xlu0 16
    %544 = vperm.xlu0 %543, %v46
    %v545 = vpop.permute.xlu0 %544
    %v547 = vlaneseq
    %v548 = vshrl.u32 %v547, 7
    %v549 = vsub.s32 1, %v548
    %v550 = vrot.slane %v171, %v549
    %v551 = vlaneseq
    %v552 = vshrl.u32 %v551, 7
    %v553 = vsub.s32 1, %v552
    %v554 = vrot.slane %v172, %v553
    %v555 = vmul.f32 %v545, %v550
    %v556 = vmul.f32 %v545, %v554
    %v557 = vadd.f32 %v541, %v555
    %v558 = vadd.f32 %v542, %v556
    %559 = vset.pattern.permute.xlu0 25
    %560 = vperm.xlu0 %559, %v46
    %v561 = vpop.permute.xlu0 %560
    %v563 = vlaneseq
    %v564 = vshrl.u32 %v563, 7
    %v565 = vsub.s32 2, %v564
    %v566 = vrot.slane %v171, %v565
    %v567 = vlaneseq
    %v568 = vshrl.u32 %v567, 7
    %v569 = vsub.s32 2, %v568
    %v570 = vrot.slane %v172, %v569
    %v571 = vmul.f32 %v561, %v566
    %v572 = vmul.f32 %v561, %v570
    %v573 = vadd.f32 %v557, %v571
    %v574 = vadd.f32 %v558, %v572
    %575 = vset.pattern.permute.xlu0 8
    %576 = vperm.xlu0 %575, %v46
    %v577 = vpop.permute.xlu0 %576
    %v579 = vlaneseq
    %v580 = vshrl.u32 %v579, 7
    %v581 = vsub.s32 0, %v580
    %v582 = vrot.slane %v188, %v581
    %v583 = vlaneseq
    %v584 = vshrl.u32 %v583, 7
    %v585 = vsub.s32 0, %v584
    %v586 = vrot.slane %v189, %v585
    %v587 = vmul.f32 %v577, %v582
    %v588 = vmul.f32 %v577, %v586
    %v589 = vadd.f32 %v573, %v587
    %v590 = vadd.f32 %v574, %v588
    %591 = vset.pattern.permute.xlu0 17
    %592 = vperm.xlu0 %591, %v46
    %v593 = vpop.permute.xlu0 %592
    %v595 = vlaneseq
    %v596 = vshrl.u32 %v595, 7
    %v597 = vsub.s32 1, %v596
    %v598 = vrot.slane %v188, %v597
    %v599 = vlaneseq
    %v600 = vshrl.u32 %v599, 7
    %v601 = vsub.s32 1, %v600
    %v602 = vrot.slane %v189, %v601
    %v603 = vmul.f32 %v593, %v598
    %v604 = vmul.f32 %v593, %v602
    %v605 = vadd.f32 %v589, %v603
    %v606 = vadd.f32 %v590, %v604
    %607 = vset.pattern.permute.xlu0 26
    %608 = vperm.xlu0 %607, %v46
    %v609 = vpop.permute.xlu0 %608
    %v611 = vlaneseq
    %v612 = vshrl.u32 %v611, 7
    %v613 = vsub.s32 2, %v612
    %v614 = vrot.slane %v188, %v613
    %v615 = vlaneseq
    %v616 = vshrl.u32 %v615, 7
    %v617 = vsub.s32 2, %v616
    %v618 = vrot.slane %v189, %v617
    %v619 = vmul.f32 %v609, %v614
    %v620 = vmul.f32 %v609, %v618
    %v621 = vadd.f32 %v605, %v619
    %v622 = vadd.f32 %v606, %v620
    %v623 = vadd.f32 %v333, %v477
    %v624 = vadd.f32 %v334, %v478
    %v625 = vadd.f32 %v623, %v621
    %v626 = vadd.f32 %v624, %v622
    %v627 = vlaneseq
    %v628 = vshrl.u32 %v627, 7
    %v629 = vsub.s32 3, %v628
    %v630 = vrot.slane %v69, %v629
    %v631 = vlaneseq
    %v632 = vshrl.u32 %v631, 7
    %v633 = vsub.s32 3, %v632
    %v634 = vrot.slane %v70, %v633
    %v635 = vmul.f32 %v193, %v630
    %v636 = vmul.f32 %v193, %v634
    %v637 = vadd.f32 %v635, 0.0
    %v638 = vadd.f32 %v636, 0.0
    %v639 = vlaneseq
    %v640 = vshrl.u32 %v639, 7
    %v641 = vsub.s32 4, %v640
    %v642 = vrot.slane %v69, %v641
    %v643 = vlaneseq
    %v644 = vshrl.u32 %v643, 7
    %v645 = vsub.s32 4, %v644
    %v646 = vrot.slane %v70, %v645
    %v647 = vmul.f32 %v209, %v642
    %v648 = vmul.f32 %v209, %v646
    %v649 = vadd.f32 %v637, %v647
    %v650 = vadd.f32 %v638, %v648
    %v651 = vlaneseq
    %v652 = vshrl.u32 %v651, 7
    %v653 = vsub.s32 5, %v652
    %v654 = vrot.slane %v69, %v653
    %v655 = vlaneseq
    %v656 = vshrl.u32 %v655, 7
    %v657 = vsub.s32 5, %v656
    %v658 = vrot.slane %v70, %v657
    %v659 = vmul.f32 %v225, %v654
    %v660 = vmul.f32 %v225, %v658
    %v661 = vadd.f32 %v649, %v659
    %v662 = vadd.f32 %v650, %v660
    %v663 = vlaneseq
    %v664 = vshrl.u32 %v663, 7
    %v665 = vsub.s32 3, %v664
    %v666 = vrot.slane %v86, %v665
    %v667 = vlaneseq
    %v668 = vshrl.u32 %v667, 7
    %v669 = vsub.s32 3, %v668
    %v670 = vrot.slane %v87, %v669
    %v671 = vmul.f32 %v241, %v666
    %v672 = vmul.f32 %v241, %v670
    %v673 = vadd.f32 %v661, %v671
    %v674 = vadd.f32 %v662, %v672
    %v675 = vlaneseq
    %v676 = vshrl.u32 %v675, 7
    %v677 = vsub.s32 4, %v676
    %v678 = vrot.slane %v86, %v677
    %v679 = vlaneseq
    %v680 = vshrl.u32 %v679, 7
    %v681 = vsub.s32 4, %v680
    %v682 = vrot.slane %v87, %v681
    %v683 = vmul.f32 %v257, %v678
    %v684 = vmul.f32 %v257, %v682
    %v685 = vadd.f32 %v673, %v683
    %v686 = vadd.f32 %v674, %v684
    %v687 = vlaneseq
    %v688 = vshrl.u32 %v687, 7
    %v689 = vsub.s32 5, %v688
    %v690 = vrot.slane %v86, %v689
    %v691 = vlaneseq
    %v692 = vshrl.u32 %v691, 7
    %v693 = vsub.s32 5, %v692
    %v694 = vrot.slane %v87, %v693
    %v695 = vmul.f32 %v273, %v690
    %v696 = vmul.f32 %v273, %v694
    %v697 = vadd.f32 %v685, %v695
    %v698 = vadd.f32 %v686, %v696
    %v699 = vlaneseq
    %v700 = vshrl.u32 %v699, 7
    %v701 = vsub.s32 3, %v700
    %v702 = vrot.slane %v103, %v701
    %v703 = vlaneseq
    %v704 = vshrl.u32 %v703, 7
    %v705 = vsub.s32 3, %v704
    %v706 = vrot.slane %v104, %v705
    %v707 = vmul.f32 %v289, %v702
    %v708 = vmul.f32 %v289, %v706
    %v709 = vadd.f32 %v697, %v707
    %v710 = vadd.f32 %v698, %v708
    %v711 = vlaneseq
    %v712 = vshrl.u32 %v711, 7
    %v713 = vsub.s32 4, %v712
    %v714 = vrot.slane %v103, %v713
    %v715 = vlaneseq
    %v716 = vshrl.u32 %v715, 7
    %v717 = vsub.s32 4, %v716
    %v718 = vrot.slane %v104, %v717
    %v719 = vmul.f32 %v305, %v714
    %v720 = vmul.f32 %v305, %v718
    %v721 = vadd.f32 %v709, %v719
    %v722 = vadd.f32 %v710, %v720
    %v723 = vlaneseq
    %v724 = vshrl.u32 %v723, 7
    %v725 = vsub.s32 5, %v724
    %v726 = vrot.slane %v103, %v725
    %v727 = vlaneseq
    %v728 = vshrl.u32 %v727, 7
    %v729 = vsub.s32 5, %v728
    %v730 = vrot.slane %v104, %v729
    %v731 = vmul.f32 %v321, %v726
    %v732 = vmul.f32 %v321, %v730
    %v733 = vadd.f32 %v721, %v731
    %v734 = vadd.f32 %v722, %v732
    %v735 = vlaneseq
    %v736 = vshrl.u32 %v735, 7
    %v737 = vsub.s32 3, %v736
    %v738 = vrot.slane %v120, %v737
    %v739 = vlaneseq
    %v740 = vshrl.u32 %v739, 7
    %v741 = vsub.s32 3, %v740
    %v742 = vrot.slane %v121, %v741
    %v743 = vmul.f32 %v337, %v738
    %v744 = vmul.f32 %v337, %v742
    %v745 = vadd.f32 %v743, 0.0
    %v746 = vadd.f32 %v744, 0.0
    %v747 = vlaneseq
    %v748 = vshrl.u32 %v747, 7
    %v749 = vsub.s32 4, %v748
    %v750 = vrot.slane %v120, %v749
    %v751 = vlaneseq
    %v752 = vshrl.u32 %v751, 7
    %v753 = vsub.s32 4, %v752
    %v754 = vrot.slane %v121, %v753
    %v755 = vmul.f32 %v353, %v750
    %v756 = vmul.f32 %v353, %v754
    %v757 = vadd.f32 %v745, %v755
    %v758 = vadd.f32 %v746, %v756
    %v759 = vlaneseq
    %v760 = vshrl.u32 %v759, 7
    %v761 = vsub.s32 5, %v760
    %v762 = vrot.slane %v120, %v761
    %v763 = vlaneseq
    %v764 = vshrl.u32 %v763, 7
    %v765 = vsub.s32 5, %v764
    %v766 = vrot.slane %v121, %v765
    %v767 = vmul.f32 %v369, %v762
    %v768 = vmul.f32 %v369, %v766
    %v769 = vadd.f32 %v757, %v767
    %v770 = vadd.f32 %v758, %v768
    %v771 = vlaneseq
    %v772 = vshrl.u32 %v771, 7
    %v773 = vsub.s32 3, %v772
    %v774 = vrot.slane %v44, %v773
    %v775 = vlaneseq
    %v776 = vshrl.u32 %v775, 7
    %v777 = vsub.s32 3, %v776
    %v778 = vrot.slane %v45, %v777
    %v779 = vmul.f32 %v385, %v774
    %v780 = vmul.f32 %v385, %v778
    %v781 = vadd.f32 %v769, %v779
    %v782 = vadd.f32 %v770, %v780
    %v783 = vlaneseq
    %v784 = vshrl.u32 %v783, 7
    %v785 = vsub.s32 4, %v784
    %v786 = vrot.slane %v44, %v785
    %v787 = vlaneseq
    %v788 = vshrl.u32 %v787, 7
    %v789 = vsub.s32 4, %v788
    %v790 = vrot.slane %v45, %v789
    %v791 = vmul.f32 %v401, %v786
    %v792 = vmul.f32 %v401, %v790
    %v793 = vadd.f32 %v781, %v791
    %v794 = vadd.f32 %v782, %v792
    %v795 = vlaneseq
    %v796 = vshrl.u32 %v795, 7
    %v797 = vsub.s32 5, %v796
    %v798 = vrot.slane %v44, %v797
    %v799 = vlaneseq
    %v800 = vshrl.u32 %v799, 7
    %v801 = vsub.s32 5, %v800
    %v802 = vrot.slane %v45, %v801
    %v803 = vmul.f32 %v417, %v798
    %v804 = vmul.f32 %v417, %v802
    %v805 = vadd.f32 %v793, %v803
    %v806 = vadd.f32 %v794, %v804
    %v807 = vlaneseq
    %v808 = vshrl.u32 %v807, 7
    %v809 = vsub.s32 3, %v808
    %v810 = vrot.slane %v137, %v809
    %v811 = vlaneseq
    %v812 = vshrl.u32 %v811, 7
    %v813 = vsub.s32 3, %v812
    %v814 = vrot.slane %v138, %v813
    %v815 = vmul.f32 %v433, %v810
    %v816 = vmul.f32 %v433, %v814
    %v817 = vadd.f32 %v805, %v815
    %v818 = vadd.f32 %v806, %v816
    %v819 = vlaneseq
    %v820 = vshrl.u32 %v819, 7
    %v821 = vsub.s32 4, %v820
    %v822 = vrot.slane %v137, %v821
    %v823 = vlaneseq
    %v824 = vshrl.u32 %v823, 7
    %v825 = vsub.s32 4, %v824
    %v826 = vrot.slane %v138, %v825
    %v827 = vmul.f32 %v449, %v822
    %v828 = vmul.f32 %v449, %v826
    %v829 = vadd.f32 %v817, %v827
    %v830 = vadd.f32 %v818, %v828
    %v831 = vlaneseq
    %v832 = vshrl.u32 %v831, 7
    %v833 = vsub.s32 5, %v832
    %v834 = vrot.slane %v137, %v833
    %v835 = vlaneseq
    %v836 = vshrl.u32 %v835, 7
    %v837 = vsub.s32 5, %v836
    %v838 = vrot.slane %v138, %v837
    %v839 = vmul.f32 %v465, %v834
    %v840 = vmul.f32 %v465, %v838
    %v841 = vadd.f32 %v829, %v839
    %v842 = vadd.f32 %v830, %v840
    %v843 = vlaneseq
    %v844 = vshrl.u32 %v843, 7
    %v845 = vsub.s32 3, %v844
    %v846 = vrot.slane %v154, %v845
    %v847 = vlaneseq
    %v848 = vshrl.u32 %v847, 7
    %v849 = vsub.s32 3, %v848
    %v850 = vrot.slane %v155, %v849
    %v851 = vmul.f32 %v481, %v846
    %v852 = vmul.f32 %v481, %v850
    %v853 = vadd.f32 %v851, 0.0
    %v854 = vadd.f32 %v852, 0.0
    %v855 = vlaneseq
    %v856 = vshrl.u32 %v855, 7
    %v857 = vsub.s32 4, %v856
    %v858 = vrot.slane %v154, %v857
    %v859 = vlaneseq
    %v860 = vshrl.u32 %v859, 7
    %v861 = vsub.s32 4, %v860
    %v862 = vrot.slane %v155, %v861
    %v863 = vmul.f32 %v497, %v858
    %v864 = vmul.f32 %v497, %v862
    %v865 = vadd.f32 %v853, %v863
    %v866 = vadd.f32 %v854, %v864
    %v867 = vlaneseq
    %v868 = vshrl.u32 %v867, 7
    %v869 = vsub.s32 5, %v868
    %v870 = vrot.slane %v154, %v869
    %v871 = vlaneseq
    %v872 = vshrl.u32 %v871, 7
    %v873 = vsub.s32 5, %v872
    %v874 = vrot.slane %v155, %v873
    %v875 = vmul.f32 %v513, %v870
    %v876 = vmul.f32 %v513, %v874
    %v877 = vadd.f32 %v865, %v875
    %v878 = vadd.f32 %v866, %v876
    %v879 = vlaneseq
    %v880 = vshrl.u32 %v879, 7
    %v881 = vsub.s32 3, %v880
    %v882 = vrot.slane %v171, %v881
    %v883 = vlaneseq
    %v884 = vshrl.u32 %v883, 7
    %v885 = vsub.s32 3, %v884
    %v886 = vrot.slane %v172, %v885
    %v887 = vmul.f32 %v529, %v882
    %v888 = vmul.f32 %v529, %v886
    %v889 = vadd.f32 %v877, %v887
    %v890 = vadd.f32 %v878, %v888
    %v891 = vlaneseq
    %v892 = vshrl.u32 %v891, 7
    %v893 = vsub.s32 4, %v892
    %v894 = vrot.slane %v171, %v893
    %v895 = vlaneseq
    %v896 = vshrl.u32 %v895, 7
    %v897 = vsub.s32 4, %v896
    %v898 = vrot.slane %v172, %v897
    %v899 = vmul.f32 %v545, %v894
    %v900 = vmul.f32 %v545, %v898
    %v901 = vadd.f32 %v889, %v899
    %v902 = vadd.f32 %v890, %v900
    %v903 = vlaneseq
    %v904 = vshrl.u32 %v903, 7
    %v905 = vsub.s32 5, %v904
    %v906 = vrot.slane %v171, %v905
    %v907 = vlaneseq
    %v908 = vshrl.u32 %v907, 7
    %v909 = vsub.s32 5, %v908
    %v910 = vrot.slane %v172, %v909
    %v911 = vmul.f32 %v561, %v906
    %v912 = vmul.f32 %v561, %v910
    %v913 = vadd.f32 %v901, %v911
    %v914 = vadd.f32 %v902, %v912
    %v915 = vlaneseq
    %v916 = vshrl.u32 %v915, 7
    %v917 = vsub.s32 3, %v916
    %v918 = vrot.slane %v188, %v917
    %v919 = vlaneseq
    %v920 = vshrl.u32 %v919, 7
    %v921 = vsub.s32 3, %v920
    %v922 = vrot.slane %v189, %v921
    %v923 = vmul.f32 %v577, %v918
    %v924 = vmul.f32 %v577, %v922
    %v925 = vadd.f32 %v913, %v923
    %v926 = vadd.f32 %v914, %v924
    %v927 = vlaneseq
    %v928 = vshrl.u32 %v927, 7
    %v929 = vsub.s32 4, %v928
    %v930 = vrot.slane %v188, %v929
    %v931 = vlaneseq
    %v932 = vshrl.u32 %v931, 7
    %v933 = vsub.s32 4, %v932
    %v934 = vrot.slane %v189, %v933
    %v935 = vmul.f32 %v593, %v930
    %v936 = vmul.f32 %v593, %v934
    %v937 = vadd.f32 %v925, %v935
    %v938 = vadd.f32 %v926, %v936
    %v939 = vlaneseq
    %v940 = vshrl.u32 %v939, 7
    %v941 = vsub.s32 5, %v940
    %v942 = vrot.slane %v188, %v941
    %v943 = vlaneseq
    %v944 = vshrl.u32 %v943, 7
    %v945 = vsub.s32 5, %v944
    %v946 = vrot.slane %v189, %v945
    %v947 = vmul.f32 %v609, %v942
    %v948 = vmul.f32 %v609, %v946
    %v949 = vadd.f32 %v937, %v947
    %v950 = vadd.f32 %v938, %v948
    %v951 = vadd.f32 %v733, %v841
    %v952 = vadd.f32 %v734, %v842
    %v953 = vadd.f32 %v951, %v949
    %v954 = vadd.f32 %v952, %v950
    %vm955 = vcmask 1043456
    %v956 = vsel %vm955, %v625, 0.0
    %v957 = vsel %vm955, %v626, 0.0
    %v958 = vadd.f32 %v956, %v957
    %959 = vadd.xlane.f32.xlu0 %v958
    %v960 = vpop.xlane.xlu0 %959
    %v961 = vadd.f32 %v960, 0.0
    %v962 = vsel %vm955, %v953, 0.0
    %v963 = vsel %vm955, %v954, 0.0
    %v964 = vadd.f32 %v962, %v963
    %965 = vadd.xlane.f32.xlu0 %v964
    %v966 = vpop.xlane.xlu0 %965
    %v967 = vadd.f32 %v961, %v966
    %v968 = vmul.f32 %v967, 0.001953125
    %v969 = vsub.f32 %v625, %v968
    %v970 = vsub.f32 %v626, %v968
    %v971 = vsub.f32 %v953, %v968
    %v972 = vsub.f32 %v954, %v968
    %v973 = vmul.f32 %v969, %v969
    %v974 = vmul.f32 %v970, %v970
    %v975 = vsel %vm955, %v973, 0.0
    %v976 = vsel %vm955, %v974, 0.0
    %v977 = vadd.f32 %v975, %v976
    %978 = vadd.xlane.f32.xlu0 %v977
    %v979 = vpop.xlane.xlu0 %978
    %v980 = vadd.f32 %v979, 0.0
    %v981 = vmul.f32 %v971, %v971
    %v982 = vmul.f32 %v972, %v972
    %v983 = vsel %vm955, %v981, 0.0
    %v984 = vsel %vm955, %v982, 0.0
    %v985 = vadd.f32 %v983, %v984
    %986 = vadd.xlane.f32.xlu0 %v985
    %v987 = vpop.xlane.xlu0 %986
    %v988 = vadd.f32 %v980, %v987
    %v989 = vmul.f32 %v988, 0.001953125
    %v990 = vadd.f32 %v989, 1e-05
    %v991 = vrsqrt.pop %v990
    %v992 = vmul.f32 %v47, %v991
    %994 = vset.pattern.permute.xlu0 0
    %995 = vperm.xlu0 %994, %v992
    %v996 = vpop.permute.xlu0 %995
    %v998 = vmul.f32 %v969, %v996
    %v999 = vmul.f32 %v970, %v996
    %1001 = vset.pattern.permute.xlu0 1
    %1002 = vperm.xlu0 %1001, %v47
    %v1003 = vpop.permute.xlu0 %1002
    %v1005 = vadd.f32 %v998, %v1003
    %v1006 = vadd.f32 %v999, %v1003
    %v1007 = vmax.f32 %v1005, 0.0
    %v1008 = vmax.f32 %v1006, 0.0
    %v1009 = vsel %vm955, %v1007, 0.0
    %v1010 = vsel %vm955, %v1008, 0.0
    %v1011 = vadd.f32 %v1009, %v1010
    %1012 = vadd.xlane.f32.xlu0 %v1011
    %v1013 = vpop.xlane.xlu0 %1012
    %v1014 = vmul.f32 %v1013, 0.00390625
    %v1015 = vmul.f32 %v1014, %v1014
    %vm1016 = vcmask 3072
    %v1017 = vsel %vm1016, %v1015, 0.0
    %1018 = vadd.xlane.f32.xlu0 %v1017
    %v1019 = vpop.xlane.xlu0 %1018
    %v1020 = vrot.slane %v1019, 4
    %v1021 = vadd.f32 %v1019, %v1020
    %v1022 = vrot.slane %v1021, 2
    %v1023 = vadd.f32 %v1021, %v1022
    %v1024 = vrot.slane %v1023, 1
    %v1025 = vadd.f32 %v1023, %v1024
    %s1026 = vtos %v1025
    %v1027 = vstv %s1026
    %v1028 = vadd.f32 %v1027, 0.0
    %v1029 = vmul.f32 %v971, %v996
    %v1030 = vmul.f32 %v972, %v996
    %v1031 = vadd.f32 %v1029, %v1003
    %v1032 = vadd.f32 %v1030, %v1003
    %v1033 = vmax.f32 %v1031, 0.0
    %v1034 = vmax.f32 %v1032, 0.0
    %v1035 = vsel %vm955, %v1033, 0.0
    %v1036 = vsel %vm955, %v1034, 0.0
    %v1037 = vadd.f32 %v1035, %v1036
    %1038 = vadd.xlane.f32.xlu0 %v1037
    %v1039 = vpop.xlane.xlu0 %1038
    %v1040 = vmul.f32 %v1039, 0.00390625
    %v1041 = vmul.f32 %v1040, %v1040
    %v1042 = vsel %vm1016, %v1041, 0.0
    %1043 = vadd.xlane.f32.xlu0 %v1042
    %v1044 = vpop.xlane.xlu0 %1043
    %v1045 = vrot.slane %v1044, 4
    %v1046 = vadd.f32 %v1044, %v1045
    %v1047 = vrot.slane %v1046, 2
    %v1048 = vadd.f32 %v1046, %v1047
    %v1049 = vrot.slane %v1048, 1
    %v1050 = vadd.f32 %v1048, %v1049
    %s1051 = vtos %v1050
    %v1052 = vstv %s1051
    %v1053 = vadd.f32 %v1028, %v1052
    %v1054 = vrsqrt.pop %v1053
    %v1055 = vmul.f32 %v1053, %v1054
    %vm1056 = vcmp.eq.f32.partialorder %v1053, inf
    %v1057 = vsel %vm1056, %v1053, %v1055
    %vm1058 = vcmp.eq.f32.partialorder %v1053, 0.0
    %v1059 = vand.u32 %v1053, 2147483648
    %v1060 = vsel %vm1058, %v1059, %v1057
    %vm1061 = vcmask 0
    %1062 = vst.msk [vmem:[#allocation7] sm:$0x1] %vm1061, %v1060
    // Predicated region
    $region26: #{tpu_custom_call.1} parent=1 // pred_check
      _
    $region27: #{tpu_custom_call.1} parent=1 // pred_check_branch
      %1064 = sbr.rel (0) target = $region29
    $region28: #{tpu_custom_call.1} parent=1 // pred_region
      %s1066 = ssub.s32 16, 16
      %1067 = vsyncadd [#allocation4], %s1066
      %s1069 = sshll.u32 [#allocation7], 4
      %s1070 = int_to_ptr.vmem [resolvable:$true] %s1069
      %1072 = dma.vmem_to_hbm [thread:$0]  %s1070, 16, %s4, [#allocation4]
    $region29: #{tpu_custom_call.1} parent=1 // pred_fallthru
      _
    // Predicated region
    $region30: #{tpu_custom_call.1} parent=1 // pred_check
      _
    $region31: #{tpu_custom_call.1} parent=1 // pred_check_branch
      %1074 = sbr.rel (0) target = $region33
    $region32: #{tpu_custom_call.1} parent=1 // pred_region
      %1075 = dma.done [#allocation4], 16
    $region33: #{tpu_custom_call.1} parent=1 // pred_fallthru
      _
    %1076 = vsyncpa [#allocation3], 1
    %1077 = vsyncpa [#allocation6], 1
    %1078 = vsyncpa [#allocation4], 1

</llo_original>
